<compile_context>
chip_gen: v6e
topology: v6e:2x2x1
jax: 0.10.0
libtpu: 0.0.40
codegen_flags: <defaults>
</compile_context>

<pallas_src>
import jax
import jax.numpy as jnp
from jax.experimental import pallas as pl
from jax.experimental.pallas import tpu as pltpu

NUM_CLASSES = 10
PAD_CLASSES = 128   # pad classifier output width to a lane-dense 128, slice later
HIDDEN = 512
FEAT = 128          # == PAD_CLASSES, so enc_b and b2p share one (2, 128) block
BN_EPS = 1e-5


def fused_forward_kernel(x_ref, wpp_ref, w1_ref, gb_ref, bv_ref, w2_ref, out_ref):
    # x_ref: (N, C*H*W) f32 -- one micro-batch per grid step.
    x = x_ref[...]

    # ---- stand-in frozen encoder: pool+projection folded into one bf16 matmul ----
    feats = jnp.dot(x.astype(jnp.bfloat16), wpp_ref[...],
                    preferred_element_type=jnp.float32) + bv_ref[0:1, :]     # (N, FEAT)

    # ---- Linear(128 -> 512): bf16 MXU inputs, f32 accumulation.
    # b1 is omitted: a constant per-feature shift cancels exactly in train-mode BN.
    h = jnp.dot(feats.astype(jnp.bfloat16), w1_ref[...],
                preferred_element_type=jnp.float32)                          # (N, HIDDEN)

    # ---- BatchNorm1d(512), training-mode batch stats, f32 math.
    # Batch-dim (sublane) reductions as ones-row matmuls on the idle MXU;
    # centered two-pass variance (no E[h^2]-mean^2 cancellation, never negative).
    n_rows = h.shape[0]
    inv_n = 1.0 / n_rows
    ones_row = jnp.ones((1, n_rows), jnp.float32)
    mean = jnp.dot(ones_row, h, preferred_element_type=jnp.float32) * inv_n  # (1, HIDDEN)
    centered = h - mean
    var = jnp.dot(ones_row, centered * centered,
                  preferred_element_type=jnp.float32) * inv_n                # (1, HIDDEN)
    hn = centered * jax.lax.rsqrt(var + BN_EPS)
    hn = hn * gb_ref[0:1, :] + gb_ref[1:2, :]                                # gamma, beta

    # ---- ReLU ----
    r = jnp.maximum(hn, 0.0)

    # ---- Linear(512 -> num_classes), zero-padded to PAD_CLASSES lanes ----
    out_ref[...] = jnp.dot(r.astype(jnp.bfloat16), w2_ref[...],
                           preferred_element_type=jnp.float32) + bv_ref[1:2, :]


def cifar_classifier_forward(x, params):
    """Forward pass.

    x: (N, C, H, W)    -> (N, NUM_CLASSES)      single micro-batch, or
       (B, N, C, H, W) -> (B, N, NUM_CLASSES)   B independent micro-batches, one per
                                                grid step (BN stats are per micro-batch,
                                                matching B separate module calls).
    """
    squeeze_batch = (x.ndim == 4)
    if squeeze_batch:
        x = x[None]
    b, n, c, h, w = x.shape
    chw = c * h * w
    x3 = x.reshape(b, n, chw)   # contiguous reshape; feature axis becomes the lane axis
    # NOTE: the PyTorch module calls .squeeze() on the backbone features; the stand-in
    # encoder already yields (N, FEAT) so it is deliberately dropped (it would silently
    # remove the batch dim when N == 1).

    const2d = lambda i: (0, 0)   # weights: fetched once, VMEM-resident across the grid
    out = pl.pallas_call(
        fused_forward_kernel,
        out_shape=jax.ShapeDtypeStruct((b, n, PAD_CLASSES), jnp.float32),
        grid=(b,),
        in_specs=[
            pl.BlockSpec((None, n, chw), lambda i: (i, 0, 0)),      # x   (per-step block)
            pl.BlockSpec((chw, FEAT), const2d),                     # W_pp (bf16)
            pl.BlockSpec((FEAT, HIDDEN), const2d),                  # W1   (bf16)
            pl.BlockSpec((2, HIDDEN), const2d),                     # [gamma; beta]
            pl.BlockSpec((2, PAD_CLASSES), const2d),                # [enc_b; b2p]
            pl.BlockSpec((HIDDEN, PAD_CLASSES), const2d),           # W2p  (bf16)
        ],
        out_specs=pl.BlockSpec((None, n, PAD_CLASSES), lambda i: (i, 0, 0)),
        compiler_params=pltpu.CompilerParams(
            dimension_semantics=("parallel",),      # shard micro-batches over v7x's 2 TCs
            vmem_limit_bytes=32 << 20,
        ),
    )(x3, params["w_pp"], params["w1"], params["gb"], params["bv"], params["w2p"])

    logits = out[..., :NUM_CLASSES]
    return logits[0] if squeeze_batch else logits


def init_params(key, in_channels, hw):
    """One-time param prep: encoder fold, lane-dense padding, vector packing and
    bf16 MXU weights are all done here, not per forward call."""
    ks = jax.random.split(key, 6)
    scale = 0.05

    # Stand-in frozen encoder: global-average-pool + Linear(C, FEAT), folded into
    # one matmul  W_pp[c*HW + s, f] = enc_w[c, f] / HW   (x flattened as (N, C*H*W)).
    enc_w = scale * jax.random.normal(ks[0], (in_channels, FEAT), jnp.float32)
    enc_b = scale * jax.random.normal(ks[1], (FEAT,), jnp.float32)
    w_pp = jnp.repeat(enc_w / hw, hw, axis=0)                      # (C*HW, FEAT)

    # Classifier head. b1 intentionally absent (cancels under train-mode BN).
    w1 = scale * jax.random.normal(ks[2], (FEAT, HIDDEN), jnp.float32)
    gamma = jnp.ones((HIDDEN,), jnp.float32)
    beta = jnp.zeros((HIDDEN,), jnp.float32)
    w2 = scale * jax.random.normal(ks[3], (HIDDEN, NUM_CLASSES), jnp.float32)
    b2 = scale * jax.random.normal(ks[4], (NUM_CLASSES,), jnp.float32)

    # Lane-dense padding of the final projection, hoisted to init.
    w2p = jnp.zeros((HIDDEN, PAD_CLASSES), jnp.float32).at[:, :NUM_CLASSES].set(w2)
    b2p = jnp.zeros((PAD_CLASSES,), jnp.float32).at[:NUM_CLASSES].set(b2)

    return {
        "w_pp": w_pp.astype(jnp.bfloat16),                 # bf16 MXU input
        "w1": w1.astype(jnp.bfloat16),                     # bf16 MXU input
        "gb": jnp.stack([gamma, beta]),                    # (2, HIDDEN) f32, packed
        "bv": jnp.stack([enc_b, b2p]),                     # (2, 128) f32, packed
        "w2p": w2p.astype(jnp.bfloat16),                   # bf16 MXU input
    }


if __name__ == "__main__":
    key = jax.random.PRNGKey(0)
    kx, kp = jax.random.split(key)

    # B=2 independent micro-batches of 128 CIFAR-like images each (NCHW, matching
    # PyTorch). 128 rows per grid step fills the MXU tile height on v5e and keeps
    # BatchNorm batch statistics well defined.
    B, N, C, H, W = 2, 128, 4, 16, 16
    x = jax.random.normal(kx, (B, N, C, H, W), jnp.float32)
    params = init_params(kp, C, H * W)

    fwd = jax.jit(cifar_classifier_forward)
    logits = jax.block_until_ready(fwd(x, params))

    assert logits.shape == (B, N, NUM_CLASSES), logits.shape
    assert bool(jnp.all(jnp.isfinite(logits)))
    print("KERNEL_OK")
</pallas_src>

<mosaic_0001>
module attributes {stable_mosaic.version = 11 : i64} {
  func.func @fused_forward_kernel(%arg0: i32, %arg1: memref<1x128x1024xf32, #tpu.memory_space<vmem>>, %arg2: memref<1024x128xbf16, #tpu.memory_space<vmem>>, %arg3: memref<128x512xbf16, #tpu.memory_space<vmem>>, %arg4: memref<2x512xf32, #tpu.memory_space<vmem>>, %arg5: memref<2x128xf32, #tpu.memory_space<vmem>>, %arg6: memref<512x128xbf16, #tpu.memory_space<vmem>>, %arg7: memref<1x128x128xf32, #tpu.memory_space<vmem>>) attributes {dimension_semantics = [#tpu.dimension_semantics<parallel>], iteration_bounds = array<i64: 2>, scalar_prefetch = 0 : i64, scratch_operands = 0 : i64, tpu.core_type = #tpu.core_type<tc>, window_params = [{transform_indices = @transform_0, window_bounds = array<i64: 1, 128, 1024>}, {pipeline_mode = #tpu.pipeline_mode<synchronous>, transform_indices = @transform_1, window_bounds = array<i64: 1024, 128>}, {pipeline_mode = #tpu.pipeline_mode<synchronous>, transform_indices = @transform_2, window_bounds = array<i64: 128, 512>}, {pipeline_mode = #tpu.pipeline_mode<synchronous>, transform_indices = @transform_3, window_bounds = array<i64: 2, 512>}, {pipeline_mode = #tpu.pipeline_mode<synchronous>, transform_indices = @transform_4, window_bounds = array<i64: 2, 128>}, {pipeline_mode = #tpu.pipeline_mode<synchronous>, transform_indices = @transform_5, window_bounds = array<i64: 512, 128>}, {transform_indices = @transform_6, window_bounds = array<i64: 1, 128, 128>}]} {
    %c0 = arith.constant 0 : index
    %c0_0 = arith.constant 0 : index
    %c0_1 = arith.constant 0 : index
    %0 = vector.load %arg1[%c0, %c0_0, %c0_1] : memref<1x128x1024xf32, #tpu.memory_space<vmem>>, vector<1x128x1024xf32>
    %1 = vector.shape_cast %0 : vector<1x128x1024xf32> to vector<128x1024xf32>
    %2 = arith.truncf %1 : vector<128x1024xf32> to vector<128x1024xbf16>
    %c0_2 = arith.constant 0 : index
    %c0_3 = arith.constant 0 : index
    %3 = vector.load %arg2[%c0_2, %c0_3] : memref<1024x128xbf16, #tpu.memory_space<vmem>>, vector<1024x128xbf16>
    %cst = arith.constant dense<0.000000e+00> : vector<128x128xf32>
    %4 = tpu.matmul %2, %3, %cst {dimension_numbers = #tpu.dot_dimension_numbers<[1], [0], [0], [1], [0, 0, 1, 1], [], []>} : vector<128x1024xbf16>, vector<1024x128xbf16>, vector<128x128xf32> -> vector<128x128xf32>
    %c0_4 = arith.constant 0 : index
    %c0_5 = arith.constant 0 : index
    %5 = vector.load %arg5[%c0_4, %c0_5] : memref<2x128xf32, #tpu.memory_space<vmem>>, vector<1x128xf32>
    %6 = vector.broadcast %5 : vector<1x128xf32> to vector<128x128xf32>
    %7 = arith.addf %4, %6 : vector<128x128xf32>
    %8 = arith.truncf %7 : vector<128x128xf32> to vector<128x128xbf16>
    %c0_6 = arith.constant 0 : index
    %c0_7 = arith.constant 0 : index
    %9 = vector.load %arg3[%c0_6, %c0_7] : memref<128x512xbf16, #tpu.memory_space<vmem>>, vector<128x512xbf16>
    %cst_8 = arith.constant dense<0.000000e+00> : vector<128x512xf32>
    %10 = tpu.matmul %8, %9, %cst_8 {dimension_numbers = #tpu.dot_dimension_numbers<[1], [0], [0], [1], [0, 0, 1, 1], [], []>} : vector<128x128xbf16>, vector<128x512xbf16>, vector<128x512xf32> -> vector<128x512xf32>
    %cst_9 = arith.constant 1.000000e+00 : f32
    %11 = vector.broadcast %cst_9 : f32 to vector<1x128xf32>
    %cst_10 = arith.constant dense<0.000000e+00> : vector<1x512xf32>
    %12 = tpu.matmul %11, %10, %cst_10 {dimension_numbers = #tpu.dot_dimension_numbers<[1], [0], [0], [1], [0, 0, 1, 1], [], []>} : vector<1x128xf32>, vector<128x512xf32>, vector<1x512xf32> -> vector<1x512xf32>
    %cst_11 = arith.constant 7.812500e-03 : f32
    %13 = vector.broadcast %cst_11 : f32 to vector<1x512xf32>
    %14 = arith.mulf %12, %13 : vector<1x512xf32>
    %15 = vector.broadcast %14 : vector<1x512xf32> to vector<128x512xf32>
    %16 = arith.subf %10, %15 : vector<128x512xf32>
    %17 = arith.mulf %16, %16 : vector<128x512xf32>
    %cst_12 = arith.constant dense<0.000000e+00> : vector<1x512xf32>
    %18 = tpu.matmul %11, %17, %cst_12 {dimension_numbers = #tpu.dot_dimension_numbers<[1], [0], [0], [1], [0, 0, 1, 1], [], []>} : vector<1x128xf32>, vector<128x512xf32>, vector<1x512xf32> -> vector<1x512xf32>
    %cst_13 = arith.constant 7.812500e-03 : f32
    %19 = vector.broadcast %cst_13 : f32 to vector<1x512xf32>
    %20 = arith.mulf %18, %19 : vector<1x512xf32>
    %cst_14 = arith.constant 9.99999974E-6 : f32
    %21 = vector.broadcast %cst_14 : f32 to vector<1x512xf32>
    %22 = arith.addf %20, %21 : vector<1x512xf32>
    %23 = math.rsqrt %22 : vector<1x512xf32>
    %24 = vector.broadcast %23 : vector<1x512xf32> to vector<128x512xf32>
    %25 = arith.mulf %16, %24 : vector<128x512xf32>
    %c0_15 = arith.constant 0 : index
    %c0_16 = arith.constant 0 : index
    %26 = vector.load %arg4[%c0_15, %c0_16] : memref<2x512xf32, #tpu.memory_space<vmem>>, vector<1x512xf32>
    %27 = vector.broadcast %26 : vector<1x512xf32> to vector<128x512xf32>
    %28 = arith.mulf %25, %27 : vector<128x512xf32>
    %c1 = arith.constant 1 : index
    %c0_17 = arith.constant 0 : index
    %29 = vector.load %arg4[%c1, %c0_17] : memref<2x512xf32, #tpu.memory_space<vmem>>, vector<1x512xf32>
    %30 = vector.broadcast %29 : vector<1x512xf32> to vector<128x512xf32>
    %31 = arith.addf %28, %30 : vector<128x512xf32>
    %cst_18 = arith.constant 0.000000e+00 : f32
    %32 = vector.broadcast %cst_18 : f32 to vector<128x512xf32>
    %33 = arith.maximumf %31, %32 : vector<128x512xf32>
    %34 = arith.truncf %33 : vector<128x512xf32> to vector<128x512xbf16>
    %c0_19 = arith.constant 0 : index
    %c0_20 = arith.constant 0 : index
    %35 = vector.load %arg6[%c0_19, %c0_20] : memref<512x128xbf16, #tpu.memory_space<vmem>>, vector<512x128xbf16>
    %cst_21 = arith.constant dense<0.000000e+00> : vector<128x128xf32>
    %36 = tpu.matmul %34, %35, %cst_21 {dimension_numbers = #tpu.dot_dimension_numbers<[1], [0], [0], [1], [0, 0, 1, 1], [], []>} : vector<128x512xbf16>, vector<512x128xbf16>, vector<128x128xf32> -> vector<128x128xf32>
    %c1_22 = arith.constant 1 : index
    %c0_23 = arith.constant 0 : index
    %37 = vector.load %arg5[%c1_22, %c0_23] : memref<2x128xf32, #tpu.memory_space<vmem>>, vector<1x128xf32>
    %38 = vector.broadcast %37 : vector<1x128xf32> to vector<128x128xf32>
    %39 = arith.addf %36, %38 : vector<128x128xf32>
    %c0_24 = arith.constant 0 : index
    %c0_25 = arith.constant 0 : index
    %c0_26 = arith.constant 0 : index
    %40 = vector.load %arg7[%c0_24, %c0_25, %c0_26] : memref<1x128x128xf32, #tpu.memory_space<vmem>>, vector<1x128x128xf32>
    %41 = vector.shape_cast %40 : vector<1x128x128xf32> to vector<128x128xf32>
    %42 = vector.shape_cast %39 : vector<128x128xf32> to vector<1x128x128xf32>
    tpu.vector_store %arg7[%c0_24, %c0_25, %c0_26], %42 {strides = array<i32>} : memref<1x128x128xf32, #tpu.memory_space<vmem>>, vector<1x128x128xf32>,
    return
  }
  func.func @transform_0(%arg0: i32) -> (i32, i32, i32) {
    %c0_i32 = arith.constant 0 : i32
    %c0_i32_0 = arith.constant 0 : i32
    %c0_i32_1 = arith.constant 0 : i32
    return %arg0, %c0_i32, %c0_i32_0 : i32, i32, i32
  }
  func.func @transform_1(%arg0: i32) -> (i32, i32) {
    %c0_i32 = arith.constant 0 : i32
    %c0_i32_0 = arith.constant 0 : i32
    %c0_i32_1 = arith.constant 0 : i32
    return %c0_i32, %c0_i32_0 : i32, i32
  }
  func.func @transform_2(%arg0: i32) -> (i32, i32) {
    %c0_i32 = arith.constant 0 : i32
    %c0_i32_0 = arith.constant 0 : i32
    %c0_i32_1 = arith.constant 0 : i32
    return %c0_i32, %c0_i32_0 : i32, i32
  }
  func.func @transform_3(%arg0: i32) -> (i32, i32) {
    %c0_i32 = arith.constant 0 : i32
    %c0_i32_0 = arith.constant 0 : i32
    %c0_i32_1 = arith.constant 0 : i32
    return %c0_i32, %c0_i32_0 : i32, i32
  }
  func.func @transform_4(%arg0: i32) -> (i32, i32) {
    %c0_i32 = arith.constant 0 : i32
    %c0_i32_0 = arith.constant 0 : i32
    %c0_i32_1 = arith.constant 0 : i32
    return %c0_i32, %c0_i32_0 : i32, i32
  }
  func.func @transform_5(%arg0: i32) -> (i32, i32) {
    %c0_i32 = arith.constant 0 : i32
    %c0_i32_0 = arith.constant 0 : i32
    %c0_i32_1 = arith.constant 0 : i32
    return %c0_i32, %c0_i32_0 : i32, i32
  }
  func.func @transform_6(%arg0: i32) -> (i32, i32, i32) {
    %c0_i32 = arith.constant 0 : i32
    %c0_i32_0 = arith.constant 0 : i32
    %c0_i32_1 = arith.constant 0 : i32
    return %arg0, %c0_i32, %c0_i32_0 : i32, i32, i32
  }
}

</mosaic_0001>

<llo_original>
// kernel: cifar_classifier_forward.1
$region0: #{cifar_classifier_forward.1}
  #allocation0 [shape = 'u32[]', space=smem, size = 0x4, offset = 0x4, fixed_abs, tag = 'smem constant byte address 0x4 - core index']
  #allocation1 [shape = 'u32[144,128]{1,0:T(1,128)}', space=vmem, size = 0x12000, scoped, tag = 'internal scratch']
  %s0 = inlined_call_operand.vmem [shape: f32[2,128,1024], index: 0, kind: input, shape index: {}]
  %s1 = inlined_call_operand.vmem [shape: bf16[1024,128], index: 1, kind: input, shape index: {}]
  %s2 = inlined_call_operand.vmem [shape: bf16[128,512], index: 2, kind: input, shape index: {}]
  %s3 = inlined_call_operand.vmem [shape: f32[2,512], index: 3, kind: input, shape index: {}]
  %s4 = inlined_call_operand.vmem [shape: f32[2,128], index: 4, kind: input, shape index: {}]
  %s5 = inlined_call_operand.vmem [shape: bf16[512,128], index: 5, kind: input, shape index: {}]
  %s6 = inlined_call_operand.vmem [shape: f32[2,128,128], index: 6, kind: output, shape index: {}]
  %s7 = sld [smem:[#allocation0]]
  $region57: #{cifar_classifier_forward.1} parent=0
    _
  %s9 = ssub.s32 1, %s7
  %s10 = scalar_select 0, %s9, %s7
  loop: start=0, step=1, limit=4
  $region2: #{cifar_classifier_forward.1} parent=0 // loop_pre_header
    _
  $region3: #{cifar_classifier_forward.1} parent=0 // loop_header
    %s12 = sphi 0, %s16
    %p13 = scmp.ge.s32.totalorder %s12, 4
    %s22 = sphi 0, %s24
    %s25 = sphi 0, %s22
    %s26 = sphi 0, %s25
    %s42 = sphi 0, %s26
    %s46 = sphi 0, %s46
    %s48 = sphi 0, %s46
    %s49 = sphi 0, %s48
    %s63 = sphi 0, %s49
    %s67 = sphi 0, %s67
    %s69 = sphi 0, %s67
    %s70 = sphi 0, %s69
    %s84 = sphi 0, %s70
    %s88 = sphi 0, %s88
    %s90 = sphi 0, %s88
    %s91 = sphi 0, %s90
    %s105 = sphi 0, %s91
    %s109 = sphi 0, %s109
    %s111 = sphi 0, %s109
    %s112 = sphi 0, %s111
    %s126 = sphi 0, %s112
    %s130 = sphi 0, %s130
    %s132 = sphi 0, %s130
    %s133 = sphi 0, %s132
    %s147 = sphi 0, %s133
    %s153 = sphi 0, %s155
    %s156 = sphi 0, %s153
    %s157 = sphi 0, %s156
    %s173 = sphi 0, %s157
  $region4: #{cifar_classifier_forward.1} parent=0 // loop_header_branch
    %15 = sbr.rel (%p13) target = $region8
  $region5: #{cifar_classifier_forward.1} parent=0 // loop_body
    %s17 = ssub.s32 %s12, 1
    %s18 = ssub.s32 %s12, 2
    %s19 = sadd.s32 %s12, 1
    %s20 = ssub.s32 %s12, %s19
    %p21 = scmp.eq.s32.totalorder %s20, 0
    %s23 = sadd.s32 %s22, 1
    %s24 = scalar_select %p21, %s22, %s23
    %p27 = pneg %p21
    %p28 = scmp.eq.s32.totalorder %s12, 1
    %p29 = por %p27, %p28
    %p30 = scmp.ne.s32.totalorder %s22, %s25
    %p31 = scmp.eq.s32.totalorder %s12, 0
    %p32 = por %p30, %p31
    %p33 = scmp.ne.s32.totalorder %s22, %s25
    %p34 = scmp.eq.s32.totalorder %s17, 1
    %p35 = por %p33, %p34
    %p36 = scmp.ne.s32.totalorder %s25, %s26
    %p37 = scmp.eq.s32.totalorder %s17, 0
    %p38 = por %p36, %p37
    %p39 = scmp.ne.s32.totalorder %s25, %s26
    %p40 = scmp.eq.s32.totalorder %s18, 1
    %p41 = por %p39, %p40
    %p43 = scmp.ne.s32.totalorder %s26, %s42
    %p44 = scmp.eq.s32.totalorder %s18, 0
    %p45 = por %p43, %p44
    %s47 = sadd.s32 %s46, 1
    %p50 = scmp.eq.s32.totalorder %s12, 1
    %p51 = scmp.ne.s32.totalorder %s46, %s48
    %p52 = scmp.eq.s32.totalorder %s12, 0
    %p53 = por %p51, %p52
    %p54 = scmp.ne.s32.totalorder %s46, %s48
    %p55 = scmp.eq.s32.totalorder %s17, 1
    %p56 = por %p54, %p55
    %p57 = scmp.ne.s32.totalorder %s48, %s49
    %p58 = scmp.eq.s32.totalorder %s17, 0
    %p59 = por %p57, %p58
    %p60 = scmp.ne.s32.totalorder %s48, %s49
    %p61 = scmp.eq.s32.totalorder %s18, 1
    %p62 = por %p60, %p61
    %p64 = scmp.ne.s32.totalorder %s49, %s63
    %p65 = scmp.eq.s32.totalorder %s18, 0
    %p66 = por %p64, %p65
    %s68 = sadd.s32 %s67, 1
    %p71 = scmp.eq.s32.totalorder %s12, 1
    %p72 = scmp.ne.s32.totalorder %s67, %s69
    %p73 = scmp.eq.s32.totalorder %s12, 0
    %p74 = por %p72, %p73
    %p75 = scmp.ne.s32.totalorder %s67, %s69
    %p76 = scmp.eq.s32.totalorder %s17, 1
    %p77 = por %p75, %p76
    %p78 = scmp.ne.s32.totalorder %s69, %s70
    %p79 = scmp.eq.s32.totalorder %s17, 0
    %p80 = por %p78, %p79
    %p81 = scmp.ne.s32.totalorder %s69, %s70
    %p82 = scmp.eq.s32.totalorder %s18, 1
    %p83 = por %p81, %p82
    %p85 = scmp.ne.s32.totalorder %s70, %s84
    %p86 = scmp.eq.s32.totalorder %s18, 0
    %p87 = por %p85, %p86
    %s89 = sadd.s32 %s88, 1
    %p92 = scmp.eq.s32.totalorder %s12, 1
    %p93 = scmp.ne.s32.totalorder %s88, %s90
    %p94 = scmp.eq.s32.totalorder %s12, 0
    %p95 = por %p93, %p94
    %p96 = scmp.ne.s32.totalorder %s88, %s90
    %p97 = scmp.eq.s32.totalorder %s17, 1
    %p98 = por %p96, %p97
    %p99 = scmp.ne.s32.totalorder %s90, %s91
    %p100 = scmp.eq.s32.totalorder %s17, 0
    %p101 = por %p99, %p100
    %p102 = scmp.ne.s32.totalorder %s90, %s91
    %p103 = scmp.eq.s32.totalorder %s18, 1
    %p104 = por %p102, %p103
    %p106 = scmp.ne.s32.totalorder %s91, %s105
    %p107 = scmp.eq.s32.totalorder %s18, 0
    %p108 = por %p106, %p107
    %s110 = sadd.s32 %s109, 1
    %p113 = scmp.eq.s32.totalorder %s12, 1
    %p114 = scmp.ne.s32.totalorder %s109, %s111
    %p115 = scmp.eq.s32.totalorder %s12, 0
    %p116 = por %p114, %p115
    %p117 = scmp.ne.s32.totalorder %s109, %s111
    %p118 = scmp.eq.s32.totalorder %s17, 1
    %p119 = por %p117, %p118
    %p120 = scmp.ne.s32.totalorder %s111, %s112
    %p121 = scmp.eq.s32.totalorder %s17, 0
    %p122 = por %p120, %p121
    %p123 = scmp.ne.s32.totalorder %s111, %s112
    %p124 = scmp.eq.s32.totalorder %s18, 1
    %p125 = por %p123, %p124
    %p127 = scmp.ne.s32.totalorder %s112, %s126
    %p128 = scmp.eq.s32.totalorder %s18, 0
    %p129 = por %p127, %p128
    %s131 = sadd.s32 %s130, 1
    %p134 = scmp.eq.s32.totalorder %s12, 1
    %p135 = scmp.ne.s32.totalorder %s130, %s132
    %p136 = scmp.eq.s32.totalorder %s12, 0
    %p137 = por %p135, %p136
    %p138 = scmp.ne.s32.totalorder %s130, %s132
    %p139 = scmp.eq.s32.totalorder %s17, 1
    %p140 = por %p138, %p139
    %p141 = scmp.ne.s32.totalorder %s132, %s133
    %p142 = scmp.eq.s32.totalorder %s17, 0
    %p143 = por %p141, %p142
    %p144 = scmp.ne.s32.totalorder %s132, %s133
    %p145 = scmp.eq.s32.totalorder %s18, 1
    %p146 = por %p144, %p145
    %p148 = scmp.ne.s32.totalorder %s133, %s147
    %p149 = scmp.eq.s32.totalorder %s18, 0
    %p150 = por %p148, %p149
    %s151 = ssub.s32 %s12, %s19
    %p152 = scmp.eq.s32.totalorder %s151, 0
    %s154 = sadd.s32 %s153, 1
    %s155 = scalar_select %p152, %s153, %s154
    %p158 = pneg %p152
    %p159 = scmp.eq.s32.totalorder %s12, 1
    %p160 = por %p158, %p159
    %p161 = scmp.ne.s32.totalorder %s153, %s156
    %p162 = scmp.eq.s32.totalorder %s12, 0
    %p163 = por %p161, %p162
    %p164 = scmp.ne.s32.totalorder %s153, %s156
    %p165 = scmp.eq.s32.totalorder %s17, 1
    %p166 = por %p164, %p165
    %p167 = scmp.ne.s32.totalorder %s156, %s157
    %p168 = scmp.eq.s32.totalorder %s17, 0
    %p169 = por %p167, %p168
    %p170 = scmp.ne.s32.totalorder %s156, %s157
    %p171 = scmp.eq.s32.totalorder %s18, 1
    %p172 = por %p170, %p171
    %p174 = scmp.ne.s32.totalorder %s157, %s173
    %p175 = scmp.eq.s32.totalorder %s18, 0
    %p176 = por %p174, %p175
    %p177 = scmp.le.s32.totalorder 1, %s12
    %p178 = scmp.lt.s32.totalorder %s12, 3
    %p179 = pnand %p177, %p178
    %p180 = pneg %p179
    // Predicated region
    $region9: #{cifar_classifier_forward.1} parent=5 // pred_check
      _
    $region10: #{cifar_classifier_forward.1} parent=5 // pred_check_branch
      %182 = sbr.rel (%p179) target = $region12
    $region11: #{cifar_classifier_forward.1} parent=5 // pred_region
      %s183 = ssub.s32 %s12, 1
      // Predicated region
      $region13: #{cifar_classifier_forward.1} parent=11 // pred_check
        %p184 = pneg %p59
      $region14: #{cifar_classifier_forward.1} parent=11 // pred_check_branch
        %186 = sbr.rel (%p184) target = $region16
      $region15: #{cifar_classifier_forward.1} parent=11 // pred_region
        _
      $region16: #{cifar_classifier_forward.1} parent=11 // pred_fallthru
        _
      // Predicated region
      $region17: #{cifar_classifier_forward.1} parent=11 // pred_check
        %p187 = pneg %p80
      $region18: #{cifar_classifier_forward.1} parent=11 // pred_check_branch
        %189 = sbr.rel (%p187) target = $region20
      $region19: #{cifar_classifier_forward.1} parent=11 // pred_region
        _
      $region20: #{cifar_classifier_forward.1} parent=11 // pred_fallthru
        _
      // Predicated region
      $region21: #{cifar_classifier_forward.1} parent=11 // pred_check
        %p190 = pneg %p101
      $region22: #{cifar_classifier_forward.1} parent=11 // pred_check_branch
        %192 = sbr.rel (%p190) target = $region24
      $region23: #{cifar_classifier_forward.1} parent=11 // pred_region
        _
      $region24: #{cifar_classifier_forward.1} parent=11 // pred_fallthru
        _
      // Predicated region
      $region25: #{cifar_classifier_forward.1} parent=11 // pred_check
        %p193 = pneg %p122
      $region26: #{cifar_classifier_forward.1} parent=11 // pred_check_branch
        %195 = sbr.rel (%p193) target = $region28
      $region27: #{cifar_classifier_forward.1} parent=11 // pred_region
        _
      $region28: #{cifar_classifier_forward.1} parent=11 // pred_fallthru
        _
      // Predicated region
      $region29: #{cifar_classifier_forward.1} parent=11 // pred_check
        %p196 = pneg %p143
      $region30: #{cifar_classifier_forward.1} parent=11 // pred_check_branch
        %198 = sbr.rel (%p196) target = $region32
      $region31: #{cifar_classifier_forward.1} parent=11 // pred_region
        _
      $region32: #{cifar_classifier_forward.1} parent=11 // pred_fallthru
        _
    $region12: #{cifar_classifier_forward.1} parent=5 // pred_fallthru
      _
    %p199 = scmp.lt.s32.totalorder %s12, 2
    // Predicated region
    $region33: #{cifar_classifier_forward.1} parent=5 // pred_check
      %p200 = pneg %p199
    $region34: #{cifar_classifier_forward.1} parent=5 // pred_check_branch
      %202 = sbr.rel (%p200) target = $region36
    $region35: #{cifar_classifier_forward.1} parent=5 // pred_region
      // Predicated region
      $region37: #{cifar_classifier_forward.1} parent=35 // pred_check
        %p203 = pneg %p32
      $region38: #{cifar_classifier_forward.1} parent=35 // pred_check_branch
        %205 = sbr.rel (%p203) target = $region40
      $region39: #{cifar_classifier_forward.1} parent=35 // pred_region
        %p206 = scmp.lt.s32.totalorder %s12, 1
        %s207 = scalar_select %p206, %s12, 1
        %s208 = smul.addr %s207, 128
        %s209 = smul.addr %s208, 8
        %s210 = scalar_lea.vmem %s0, %s209
      $region40: #{cifar_classifier_forward.1} parent=35 // pred_fallthru
        _
    $region36: #{cifar_classifier_forward.1} parent=5 // pred_fallthru
      _
    %p211 = scmp.le.s32.totalorder 1, %s12
    %p212 = scmp.lt.s32.totalorder %s12, 3
    %p213 = pnand %p211, %p212
    %p214 = pneg %p213
    // Predicated region
    $region41: #{cifar_classifier_forward.1} parent=5 // pred_check
      _
    $region42: #{cifar_classifier_forward.1} parent=5 // pred_check_branch
      %216 = sbr.rel (%p213) target = $region44
    $region43: #{cifar_classifier_forward.1} parent=5 // pred_region
      %s217 = ssub.s32 %s12, 1
      %p218 = scmp.lt.s32.totalorder %s17, 1
      %s219 = scalar_select %p218, %s17, 1
      %s220 = smul.addr %s219, 128
      %s221 = smul.addr %s220, 8
      %s222 = scalar_lea.vmem %s0, %s221
      %p223 = pneg %p38
      %p224 = pneg %p35
      %p225 = pneg %p59
      %p226 = pneg %p56
      %p227 = pneg %p80
      %p228 = pneg %p77
      %p229 = pneg %p101
      %p230 = pneg %p98
      %p231 = pneg %p122
      %p232 = pneg %p119
      %p233 = pneg %p143
      %p234 = pneg %p140
      %p235 = pneg %p169
      %p236 = pneg %p166
      %p237 = scmp.lt.s32.totalorder %s17, 1
      %s238 = scalar_select %p237, %s17, 1
      %s239 = smul.addr %s238, 16
      %s240 = smul.addr %s239, 8
      %s241 = scalar_lea.vmem %s6, %s240
      %p242 = scmp.lt.s32.totalorder %s17, 1
      %s243 = scalar_select %p242, %s17, 1
      %s244 = smul.addr %s243, 128
      %s245 = smul.addr %s244, 8
      %s246 = scalar_lea.vmem %s0, %s245
      %p247 = scmp.lt.s32.totalorder %s17, 1
      %s248 = scalar_select %p247, %s17, 1
      %s249 = smul.addr %s248, 16
      %s250 = smul.addr %s249, 8
      %s251 = scalar_lea.vmem %s6, %s250
      %v253 = vld [vmem:[%s246] sm:$0xff]
      %v254 = vld [vmem:[%s246 + $0x8] sm:$0xff]
      %v255 = vld [vmem:[%s246 + $0x10] sm:$0xff]
      %v256 = vld [vmem:[%s246 + $0x18] sm:$0xff]
      %v257 = vld [vmem:[%s246 + $0x20] sm:$0xff]
      %v258 = vld [vmem:[%s246 + $0x28] sm:$0xff]
      %v259 = vld [vmem:[%s246 + $0x30] sm:$0xff]
      %v260 = vld [vmem:[%s246 + $0x38] sm:$0xff]
      %v261 = vld [vmem:[%s246 + $0x40] sm:$0xff]
      %v262 = vld [vmem:[%s246 + $0x48] sm:$0xff]
      %v263 = vld [vmem:[%s246 + $0x50] sm:$0xff]
      %v264 = vld [vmem:[%s246 + $0x58] sm:$0xff]
      %v265 = vld [vmem:[%s246 + $0x60] sm:$0xff]
      %v266 = vld [vmem:[%s246 + $0x68] sm:$0xff]
      %v267 = vld [vmem:[%s246 + $0x70] sm:$0xff]
      %v268 = vld [vmem:[%s246 + $0x78] sm:$0xff]
      %v269 = vld [vmem:[%s246 + $0x80] sm:$0xff]
      %v270 = vld [vmem:[%s246 + $0x88] sm:$0xff]
      %v271 = vld [vmem:[%s246 + $0x90] sm:$0xff]
      %v272 = vld [vmem:[%s246 + $0x98] sm:$0xff]
      %v273 = vld [vmem:[%s246 + $0xa0] sm:$0xff]
      %v274 = vld [vmem:[%s246 + $0xa8] sm:$0xff]
      %v275 = vld [vmem:[%s246 + $0xb0] sm:$0xff]
      %v276 = vld [vmem:[%s246 + $0xb8] sm:$0xff]
      %v277 = vld [vmem:[%s246 + $0xc0] sm:$0xff]
      %v278 = vld [vmem:[%s246 + $0xc8] sm:$0xff]
      %v279 = vld [vmem:[%s246 + $0xd0] sm:$0xff]
      %v280 = vld [vmem:[%s246 + $0xd8] sm:$0xff]
      %v281 = vld [vmem:[%s246 + $0xe0] sm:$0xff]
      %v282 = vld [vmem:[%s246 + $0xe8] sm:$0xff]
      %v283 = vld [vmem:[%s246 + $0xf0] sm:$0xff]
      %v284 = vld [vmem:[%s246 + $0xf8] sm:$0xff]
      %v285 = vld [vmem:[%s246 + $0x100] sm:$0xff]
      %v286 = vld [vmem:[%s246 + $0x108] sm:$0xff]
      %v287 = vld [vmem:[%s246 + $0x110] sm:$0xff]
      %v288 = vld [vmem:[%s246 + $0x118] sm:$0xff]
      %v289 = vld [vmem:[%s246 + $0x120] sm:$0xff]
      %v290 = vld [vmem:[%s246 + $0x128] sm:$0xff]
      %v291 = vld [vmem:[%s246 + $0x130] sm:$0xff]
      %v292 = vld [vmem:[%s246 + $0x138] sm:$0xff]
      %v293 = vld [vmem:[%s246 + $0x140] sm:$0xff]
      %v294 = vld [vmem:[%s246 + $0x148] sm:$0xff]
      %v295 = vld [vmem:[%s246 + $0x150] sm:$0xff]
      %v296 = vld [vmem:[%s246 + $0x158] sm:$0xff]
      %v297 = vld [vmem:[%s246 + $0x160] sm:$0xff]
      %v298 = vld [vmem:[%s246 + $0x168] sm:$0xff]
      %v299 = vld [vmem:[%s246 + $0x170] sm:$0xff]
      %v300 = vld [vmem:[%s246 + $0x178] sm:$0xff]
      %v301 = vld [vmem:[%s246 + $0x180] sm:$0xff]
      %v302 = vld [vmem:[%s246 + $0x188] sm:$0xff]
      %v303 = vld [vmem:[%s246 + $0x190] sm:$0xff]
      %v304 = vld [vmem:[%s246 + $0x198] sm:$0xff]
      %v305 = vld [vmem:[%s246 + $0x1a0] sm:$0xff]
      %v306 = vld [vmem:[%s246 + $0x1a8] sm:$0xff]
      %v307 = vld [vmem:[%s246 + $0x1b0] sm:$0xff]
      %v308 = vld [vmem:[%s246 + $0x1b8] sm:$0xff]
      %v309 = vld [vmem:[%s246 + $0x1c0] sm:$0xff]
      %v310 = vld [vmem:[%s246 + $0x1c8] sm:$0xff]
      %v311 = vld [vmem:[%s246 + $0x1d0] sm:$0xff]
      %v312 = vld [vmem:[%s246 + $0x1d8] sm:$0xff]
      %v313 = vld [vmem:[%s246 + $0x1e0] sm:$0xff]
      %v314 = vld [vmem:[%s246 + $0x1e8] sm:$0xff]
      %v315 = vld [vmem:[%s246 + $0x1f0] sm:$0xff]
      %v316 = vld [vmem:[%s246 + $0x1f8] sm:$0xff]
      %v317 = vld [vmem:[%s246 + $0x200] sm:$0xff]
      %v318 = vld [vmem:[%s246 + $0x208] sm:$0xff]
      %v319 = vld [vmem:[%s246 + $0x210] sm:$0xff]
      %v320 = vld [vmem:[%s246 + $0x218] sm:$0xff]
      %v321 = vld [vmem:[%s246 + $0x220] sm:$0xff]
      %v322 = vld [vmem:[%s246 + $0x228] sm:$0xff]
      %v323 = vld [vmem:[%s246 + $0x230] sm:$0xff]
      %v324 = vld [vmem:[%s246 + $0x238] sm:$0xff]
      %v325 = vld [vmem:[%s246 + $0x240] sm:$0xff]
      %v326 = vld [vmem:[%s246 + $0x248] sm:$0xff]
      %v327 = vld [vmem:[%s246 + $0x250] sm:$0xff]
      %v328 = vld [vmem:[%s246 + $0x258] sm:$0xff]
      %v329 = vld [vmem:[%s246 + $0x260] sm:$0xff]
      %v330 = vld [vmem:[%s246 + $0x268] sm:$0xff]
      %v331 = vld [vmem:[%s246 + $0x270] sm:$0xff]
      %v332 = vld [vmem:[%s246 + $0x278] sm:$0xff]
      %v333 = vld [vmem:[%s246 + $0x280] sm:$0xff]
      %v334 = vld [vmem:[%s246 + $0x288] sm:$0xff]
      %v335 = vld [vmem:[%s246 + $0x290] sm:$0xff]
      %v336 = vld [vmem:[%s246 + $0x298] sm:$0xff]
      %v337 = vld [vmem:[%s246 + $0x2a0] sm:$0xff]
      %v338 = vld [vmem:[%s246 + $0x2a8] sm:$0xff]
      %v339 = vld [vmem:[%s246 + $0x2b0] sm:$0xff]
      %v340 = vld [vmem:[%s246 + $0x2b8] sm:$0xff]
      %v341 = vld [vmem:[%s246 + $0x2c0] sm:$0xff]
      %v342 = vld [vmem:[%s246 + $0x2c8] sm:$0xff]
      %v343 = vld [vmem:[%s246 + $0x2d0] sm:$0xff]
      %v344 = vld [vmem:[%s246 + $0x2d8] sm:$0xff]
      %v345 = vld [vmem:[%s246 + $0x2e0] sm:$0xff]
      %v346 = vld [vmem:[%s246 + $0x2e8] sm:$0xff]
      %v347 = vld [vmem:[%s246 + $0x2f0] sm:$0xff]
      %v348 = vld [vmem:[%s246 + $0x2f8] sm:$0xff]
      %v349 = vld [vmem:[%s246 + $0x300] sm:$0xff]
      %v350 = vld [vmem:[%s246 + $0x308] sm:$0xff]
      %v351 = vld [vmem:[%s246 + $0x310] sm:$0xff]
      %v352 = vld [vmem:[%s246 + $0x318] sm:$0xff]
      %v353 = vld [vmem:[%s246 + $0x320] sm:$0xff]
      %v354 = vld [vmem:[%s246 + $0x328] sm:$0xff]
      %v355 = vld [vmem:[%s246 + $0x330] sm:$0xff]
      %v356 = vld [vmem:[%s246 + $0x338] sm:$0xff]
      %v357 = vld [vmem:[%s246 + $0x340] sm:$0xff]
      %v358 = vld [vmem:[%s246 + $0x348] sm:$0xff]
      %v359 = vld [vmem:[%s246 + $0x350] sm:$0xff]
      %v360 = vld [vmem:[%s246 + $0x358] sm:$0xff]
      %v361 = vld [vmem:[%s246 + $0x360] sm:$0xff]
      %v362 = vld [vmem:[%s246 + $0x368] sm:$0xff]
      %v363 = vld [vmem:[%s246 + $0x370] sm:$0xff]
      %v364 = vld [vmem:[%s246 + $0x378] sm:$0xff]
      %v365 = vld [vmem:[%s246 + $0x380] sm:$0xff]
      %v366 = vld [vmem:[%s246 + $0x388] sm:$0xff]
      %v367 = vld [vmem:[%s246 + $0x390] sm:$0xff]
      %v368 = vld [vmem:[%s246 + $0x398] sm:$0xff]
      %v369 = vld [vmem:[%s246 + $0x3a0] sm:$0xff]
      %v370 = vld [vmem:[%s246 + $0x3a8] sm:$0xff]
      %v371 = vld [vmem:[%s246 + $0x3b0] sm:$0xff]
      %v372 = vld [vmem:[%s246 + $0x3b8] sm:$0xff]
      %v373 = vld [vmem:[%s246 + $0x3c0] sm:$0xff]
      %v374 = vld [vmem:[%s246 + $0x3c8] sm:$0xff]
      %v375 = vld [vmem:[%s246 + $0x3d0] sm:$0xff]
      %v376 = vld [vmem:[%s246 + $0x3d8] sm:$0xff]
      %v377 = vld [vmem:[%s246 + $0x3e0] sm:$0xff]
      %v378 = vld [vmem:[%s246 + $0x3e8] sm:$0xff]
      %v379 = vld [vmem:[%s246 + $0x3f0] sm:$0xff]
      %v380 = vld [vmem:[%s246 + $0x3f8] sm:$0xff]
      %v381 = vpack.c.bf16 %v261, %v253
      %v382 = vpack.c.bf16 %v262, %v254
      %v383 = vpack.c.bf16 %v263, %v255
      %v384 = vpack.c.bf16 %v264, %v256
      %v385 = vpack.c.bf16 %v265, %v257
      %v386 = vpack.c.bf16 %v266, %v258
      %v387 = vpack.c.bf16 %v267, %v259
      %v388 = vpack.c.bf16 %v268, %v260
      %v389 = vpack.c.bf16 %v277, %v269
      %v390 = vpack.c.bf16 %v278, %v270
      %v391 = vpack.c.bf16 %v279, %v271
      %v392 = vpack.c.bf16 %v280, %v272
      %v393 = vpack.c.bf16 %v281, %v273
      %v394 = vpack.c.bf16 %v282, %v274
      %v395 = vpack.c.bf16 %v283, %v275
      %v396 = vpack.c.bf16 %v284, %v276
      %v397 = vpack.c.bf16 %v293, %v285
      %v398 = vpack.c.bf16 %v294, %v286
      %v399 = vpack.c.bf16 %v295, %v287
      %v400 = vpack.c.bf16 %v296, %v288
      %v401 = vpack.c.bf16 %v297, %v289
      %v402 = vpack.c.bf16 %v298, %v290
      %v403 = vpack.c.bf16 %v299, %v291
      %v404 = vpack.c.bf16 %v300, %v292
      %v405 = vpack.c.bf16 %v309, %v301
      %v406 = vpack.c.bf16 %v310, %v302
      %v407 = vpack.c.bf16 %v311, %v303
      %v408 = vpack.c.bf16 %v312, %v304
      %v409 = vpack.c.bf16 %v313, %v305
      %v410 = vpack.c.bf16 %v314, %v306
      %v411 = vpack.c.bf16 %v315, %v307
      %v412 = vpack.c.bf16 %v316, %v308
      %v413 = vpack.c.bf16 %v325, %v317
      %v414 = vpack.c.bf16 %v326, %v318
      %v415 = vpack.c.bf16 %v327, %v319
      %v416 = vpack.c.bf16 %v328, %v320
      %v417 = vpack.c.bf16 %v329, %v321
      %v418 = vpack.c.bf16 %v330, %v322
      %v419 = vpack.c.bf16 %v331, %v323
      %v420 = vpack.c.bf16 %v332, %v324
      %v421 = vpack.c.bf16 %v341, %v333
      %v422 = vpack.c.bf16 %v342, %v334
      %v423 = vpack.c.bf16 %v343, %v335
      %v424 = vpack.c.bf16 %v344, %v336
      %v425 = vpack.c.bf16 %v345, %v337
      %v426 = vpack.c.bf16 %v346, %v338
      %v427 = vpack.c.bf16 %v347, %v339
      %v428 = vpack.c.bf16 %v348, %v340
      %v429 = vpack.c.bf16 %v357, %v349
      %v430 = vpack.c.bf16 %v358, %v350
      %v431 = vpack.c.bf16 %v359, %v351
      %v432 = vpack.c.bf16 %v360, %v352
      %v433 = vpack.c.bf16 %v361, %v353
      %v434 = vpack.c.bf16 %v362, %v354
      %v435 = vpack.c.bf16 %v363, %v355
      %v436 = vpack.c.bf16 %v364, %v356
      %v437 = vpack.c.bf16 %v373, %v365
      %v438 = vpack.c.bf16 %v374, %v366
      %v439 = vpack.c.bf16 %v375, %v367
      %v440 = vpack.c.bf16 %v376, %v368
      %v441 = vpack.c.bf16 %v377, %v369
      %v442 = vpack.c.bf16 %v378, %v370
      %v443 = vpack.c.bf16 %v379, %v371
      %v444 = vpack.c.bf16 %v380, %v372
      %v445 = vld [vmem:[%s1] sm:$0xf]
      %v446 = vld [vmem:[%s1 + $0x4] sm:$0xf]
      %v447 = vld [vmem:[%s1 + $0x8] sm:$0xf]
      %v448 = vld [vmem:[%s1 + $0xc] sm:$0xf]
      %v449 = vld [vmem:[%s1 + $0x10] sm:$0xf]
      %v450 = vld [vmem:[%s1 + $0x14] sm:$0xf]
      %v451 = vld [vmem:[%s1 + $0x18] sm:$0xf]
      %v452 = vld [vmem:[%s1 + $0x1c] sm:$0xf]
      %v453 = vld [vmem:[%s1 + $0x20] sm:$0xf]
      %v454 = vld [vmem:[%s1 + $0x24] sm:$0xf]
      %v455 = vld [vmem:[%s1 + $0x28] sm:$0xf]
      %v456 = vld [vmem:[%s1 + $0x2c] sm:$0xf]
      %v457 = vld [vmem:[%s1 + $0x30] sm:$0xf]
      %v458 = vld [vmem:[%s1 + $0x34] sm:$0xf]
      %v459 = vld [vmem:[%s1 + $0x38] sm:$0xf]
      %v460 = vld [vmem:[%s1 + $0x3c] sm:$0xf]
      %v461 = vld [vmem:[%s1 + $0x40] sm:$0xf]
      %v462 = vld [vmem:[%s1 + $0x44] sm:$0xf]
      %v463 = vld [vmem:[%s1 + $0x48] sm:$0xf]
      %v464 = vld [vmem:[%s1 + $0x4c] sm:$0xf]
      %v465 = vld [vmem:[%s1 + $0x50] sm:$0xf]
      %v466 = vld [vmem:[%s1 + $0x54] sm:$0xf]
      %v467 = vld [vmem:[%s1 + $0x58] sm:$0xf]
      %v468 = vld [vmem:[%s1 + $0x5c] sm:$0xf]
      %v469 = vld [vmem:[%s1 + $0x60] sm:$0xf]
      %v470 = vld [vmem:[%s1 + $0x64] sm:$0xf]
      %v471 = vld [vmem:[%s1 + $0x68] sm:$0xf]
      %v472 = vld [vmem:[%s1 + $0x6c] sm:$0xf]
      %v473 = vld [vmem:[%s1 + $0x70] sm:$0xf]
      %v474 = vld [vmem:[%s1 + $0x74] sm:$0xf]
      %v475 = vld [vmem:[%s1 + $0x78] sm:$0xf]
      %v476 = vld [vmem:[%s1 + $0x7c] sm:$0xf]
      %v477 = vld [vmem:[%s1 + $0x80] sm:$0xf]
      %v478 = vld [vmem:[%s1 + $0x84] sm:$0xf]
      %v479 = vld [vmem:[%s1 + $0x88] sm:$0xf]
      %v480 = vld [vmem:[%s1 + $0x8c] sm:$0xf]
      %v481 = vld [vmem:[%s1 + $0x90] sm:$0xf]
      %v482 = vld [vmem:[%s1 + $0x94] sm:$0xf]
      %v483 = vld [vmem:[%s1 + $0x98] sm:$0xf]
      %v484 = vld [vmem:[%s1 + $0x9c] sm:$0xf]
      %v485 = vld [vmem:[%s1 + $0xa0] sm:$0xf]
      %v486 = vld [vmem:[%s1 + $0xa4] sm:$0xf]
      %v487 = vld [vmem:[%s1 + $0xa8] sm:$0xf]
      %v488 = vld [vmem:[%s1 + $0xac] sm:$0xf]
      %v489 = vld [vmem:[%s1 + $0xb0] sm:$0xf]
      %v490 = vld [vmem:[%s1 + $0xb4] sm:$0xf]
      %v491 = vld [vmem:[%s1 + $0xb8] sm:$0xf]
      %v492 = vld [vmem:[%s1 + $0xbc] sm:$0xf]
      %v493 = vld [vmem:[%s1 + $0xc0] sm:$0xf]
      %v494 = vld [vmem:[%s1 + $0xc4] sm:$0xf]
      %v495 = vld [vmem:[%s1 + $0xc8] sm:$0xf]
      %v496 = vld [vmem:[%s1 + $0xcc] sm:$0xf]
      %v497 = vld [vmem:[%s1 + $0xd0] sm:$0xf]
      %v498 = vld [vmem:[%s1 + $0xd4] sm:$0xf]
      %v499 = vld [vmem:[%s1 + $0xd8] sm:$0xf]
      %v500 = vld [vmem:[%s1 + $0xdc] sm:$0xf]
      %v501 = vld [vmem:[%s1 + $0xe0] sm:$0xf]
      %v502 = vld [vmem:[%s1 + $0xe4] sm:$0xf]
      %v503 = vld [vmem:[%s1 + $0xe8] sm:$0xf]
      %v504 = vld [vmem:[%s1 + $0xec] sm:$0xf]
      %v505 = vld [vmem:[%s1 + $0xf0] sm:$0xf]
      %v506 = vld [vmem:[%s1 + $0xf4] sm:$0xf]
      %v507 = vld [vmem:[%s1 + $0xf8] sm:$0xf]
      %v508 = vld [vmem:[%s1 + $0xfc] sm:$0xf]
      %v509 = vld [vmem:[%s1 + $0x100] sm:$0xf]
      %v510 = vld [vmem:[%s1 + $0x104] sm:$0xf]
      %v511 = vld [vmem:[%s1 + $0x108] sm:$0xf]
      %v512 = vld [vmem:[%s1 + $0x10c] sm:$0xf]
      %v513 = vld [vmem:[%s1 + $0x110] sm:$0xf]
      %v514 = vld [vmem:[%s1 + $0x114] sm:$0xf]
      %v515 = vld [vmem:[%s1 + $0x118] sm:$0xf]
      %v516 = vld [vmem:[%s1 + $0x11c] sm:$0xf]
      %v517 = vld [vmem:[%s1 + $0x120] sm:$0xf]
      %v518 = vld [vmem:[%s1 + $0x124] sm:$0xf]
      %v519 = vld [vmem:[%s1 + $0x128] sm:$0xf]
      %v520 = vld [vmem:[%s1 + $0x12c] sm:$0xf]
      %v521 = vld [vmem:[%s1 + $0x130] sm:$0xf]
      %v522 = vld [vmem:[%s1 + $0x134] sm:$0xf]
      %v523 = vld [vmem:[%s1 + $0x138] sm:$0xf]
      %v524 = vld [vmem:[%s1 + $0x13c] sm:$0xf]
      %v525 = vld [vmem:[%s1 + $0x140] sm:$0xf]
      %v526 = vld [vmem:[%s1 + $0x144] sm:$0xf]
      %v527 = vld [vmem:[%s1 + $0x148] sm:$0xf]
      %v528 = vld [vmem:[%s1 + $0x14c] sm:$0xf]
      %v529 = vld [vmem:[%s1 + $0x150] sm:$0xf]
      %v530 = vld [vmem:[%s1 + $0x154] sm:$0xf]
      %v531 = vld [vmem:[%s1 + $0x158] sm:$0xf]
      %v532 = vld [vmem:[%s1 + $0x15c] sm:$0xf]
      %v533 = vld [vmem:[%s1 + $0x160] sm:$0xf]
      %v534 = vld [vmem:[%s1 + $0x164] sm:$0xf]
      %v535 = vld [vmem:[%s1 + $0x168] sm:$0xf]
      %v536 = vld [vmem:[%s1 + $0x16c] sm:$0xf]
      %v537 = vld [vmem:[%s1 + $0x170] sm:$0xf]
      %v538 = vld [vmem:[%s1 + $0x174] sm:$0xf]
      %v539 = vld [vmem:[%s1 + $0x178] sm:$0xf]
      %v540 = vld [vmem:[%s1 + $0x17c] sm:$0xf]
      %v541 = vld [vmem:[%s1 + $0x180] sm:$0xf]
      %v542 = vld [vmem:[%s1 + $0x184] sm:$0xf]
      %v543 = vld [vmem:[%s1 + $0x188] sm:$0xf]
      %v544 = vld [vmem:[%s1 + $0x18c] sm:$0xf]
      %v545 = vld [vmem:[%s1 + $0x190] sm:$0xf]
      %v546 = vld [vmem:[%s1 + $0x194] sm:$0xf]
      %v547 = vld [vmem:[%s1 + $0x198] sm:$0xf]
      %v548 = vld [vmem:[%s1 + $0x19c] sm:$0xf]
      %v549 = vld [vmem:[%s1 + $0x1a0] sm:$0xf]
      %v550 = vld [vmem:[%s1 + $0x1a4] sm:$0xf]
      %v551 = vld [vmem:[%s1 + $0x1a8] sm:$0xf]
      %v552 = vld [vmem:[%s1 + $0x1ac] sm:$0xf]
      %v553 = vld [vmem:[%s1 + $0x1b0] sm:$0xf]
      %v554 = vld [vmem:[%s1 + $0x1b4] sm:$0xf]
      %v555 = vld [vmem:[%s1 + $0x1b8] sm:$0xf]
      %v556 = vld [vmem:[%s1 + $0x1bc] sm:$0xf]
      %v557 = vld [vmem:[%s1 + $0x1c0] sm:$0xf]
      %v558 = vld [vmem:[%s1 + $0x1c4] sm:$0xf]
      %v559 = vld [vmem:[%s1 + $0x1c8] sm:$0xf]
      %v560 = vld [vmem:[%s1 + $0x1cc] sm:$0xf]
      %v561 = vld [vmem:[%s1 + $0x1d0] sm:$0xf]
      %v562 = vld [vmem:[%s1 + $0x1d4] sm:$0xf]
      %v563 = vld [vmem:[%s1 + $0x1d8] sm:$0xf]
      %v564 = vld [vmem:[%s1 + $0x1dc] sm:$0xf]
      %v565 = vld [vmem:[%s1 + $0x1e0] sm:$0xf]
      %v566 = vld [vmem:[%s1 + $0x1e4] sm:$0xf]
      %v567 = vld [vmem:[%s1 + $0x1e8] sm:$0xf]
      %v568 = vld [vmem:[%s1 + $0x1ec] sm:$0xf]
      %v569 = vld [vmem:[%s1 + $0x1f0] sm:$0xf]
      %v570 = vld [vmem:[%s1 + $0x1f4] sm:$0xf]
      %v571 = vld [vmem:[%s1 + $0x1f8] sm:$0xf]
      %v572 = vld [vmem:[%s1 + $0x1fc] sm:$0xf]
      %v573 = vld [vmem:[%s4] sm:$0x1]
      %v574 = vlaneseq
      %v575 = vshrl.u32 %v574, 7
      %v576 = vsub.s32 0, %v575
      %v577 = vrot.slane %v573, %v576
      %v706 = vunpack.c.l.b16 %v445
      %v707 = vunpack.c.l.b16 %v446
      %v708 = vunpack.c.l.b16 %v447
      %v709 = vunpack.c.l.b16 %v448
      %v710 = vunpack.c.l.b16 %v449
      %v711 = vunpack.c.l.b16 %v450
      %v712 = vunpack.c.l.b16 %v451
      %v713 = vunpack.c.l.b16 %v452
      %v714 = vunpack.c.l.b16 %v453
      %v715 = vunpack.c.l.b16 %v454
      %v716 = vunpack.c.l.b16 %v455
      %v717 = vunpack.c.l.b16 %v456
      %v718 = vunpack.c.l.b16 %v457
      %v719 = vunpack.c.l.b16 %v458
      %v720 = vunpack.c.l.b16 %v459
      %v721 = vunpack.c.l.b16 %v460
      %v722 = vunpack.c.l.b16 %v461
      %v723 = vunpack.c.l.b16 %v462
      %v724 = vunpack.c.l.b16 %v463
      %v725 = vunpack.c.l.b16 %v464
      %v726 = vunpack.c.l.b16 %v465
      %v727 = vunpack.c.l.b16 %v466
      %v728 = vunpack.c.l.b16 %v467
      %v729 = vunpack.c.l.b16 %v468
      %v730 = vunpack.c.l.b16 %v469
      %v731 = vunpack.c.l.b16 %v470
      %v732 = vunpack.c.l.b16 %v471
      %v733 = vunpack.c.l.b16 %v472
      %v734 = vunpack.c.l.b16 %v473
      %v735 = vunpack.c.l.b16 %v474
      %v736 = vunpack.c.l.b16 %v475
      %v737 = vunpack.c.l.b16 %v476
      %v738 = vunpack.c.l.b16 %v477
      %v739 = vunpack.c.l.b16 %v478
      %v740 = vunpack.c.l.b16 %v479
      %v741 = vunpack.c.l.b16 %v480
      %v742 = vunpack.c.l.b16 %v481
      %v743 = vunpack.c.l.b16 %v482
      %v744 = vunpack.c.l.b16 %v483
      %v745 = vunpack.c.l.b16 %v484
      %v746 = vunpack.c.l.b16 %v485
      %v747 = vunpack.c.l.b16 %v486
      %v748 = vunpack.c.l.b16 %v487
      %v749 = vunpack.c.l.b16 %v488
      %v750 = vunpack.c.l.b16 %v489
      %v751 = vunpack.c.l.b16 %v490
      %v752 = vunpack.c.l.b16 %v491
      %v753 = vunpack.c.l.b16 %v492
      %v754 = vunpack.c.l.b16 %v493
      %v755 = vunpack.c.l.b16 %v494
      %v756 = vunpack.c.l.b16 %v495
      %v757 = vunpack.c.l.b16 %v496
      %v758 = vunpack.c.l.b16 %v497
      %v759 = vunpack.c.l.b16 %v498
      %v760 = vunpack.c.l.b16 %v499
      %v761 = vunpack.c.l.b16 %v500
      %v762 = vunpack.c.l.b16 %v501
      %v763 = vunpack.c.l.b16 %v502
      %v764 = vunpack.c.l.b16 %v503
      %v765 = vunpack.c.l.b16 %v504
      %v766 = vunpack.c.l.b16 %v505
      %v767 = vunpack.c.l.b16 %v506
      %v768 = vunpack.c.l.b16 %v507
      %v769 = vunpack.c.l.b16 %v508
      %v770 = vunpack.c.l.b16 %v509
      %v771 = vunpack.c.l.b16 %v510
      %v772 = vunpack.c.l.b16 %v511
      %v773 = vunpack.c.l.b16 %v512
      %v774 = vunpack.c.l.b16 %v513
      %v775 = vunpack.c.l.b16 %v514
      %v776 = vunpack.c.l.b16 %v515
      %v777 = vunpack.c.l.b16 %v516
      %v778 = vunpack.c.l.b16 %v517
      %v779 = vunpack.c.l.b16 %v518
      %v780 = vunpack.c.l.b16 %v519
      %v781 = vunpack.c.l.b16 %v520
      %v782 = vunpack.c.l.b16 %v521
      %v783 = vunpack.c.l.b16 %v522
      %v784 = vunpack.c.l.b16 %v523
      %v785 = vunpack.c.l.b16 %v524
      %v786 = vunpack.c.l.b16 %v525
      %v787 = vunpack.c.l.b16 %v526
      %v788 = vunpack.c.l.b16 %v527
      %v789 = vunpack.c.l.b16 %v528
      %v790 = vunpack.c.l.b16 %v529
      %v791 = vunpack.c.l.b16 %v530
      %v792 = vunpack.c.l.b16 %v531
      %v793 = vunpack.c.l.b16 %v532
      %v794 = vunpack.c.l.b16 %v533
      %v795 = vunpack.c.l.b16 %v534
      %v796 = vunpack.c.l.b16 %v535
      %v797 = vunpack.c.l.b16 %v536
      %v798 = vunpack.c.l.b16 %v537
      %v799 = vunpack.c.l.b16 %v538
      %v800 = vunpack.c.l.b16 %v539
      %v801 = vunpack.c.l.b16 %v540
      %v802 = vunpack.c.l.b16 %v541
      %v803 = vunpack.c.l.b16 %v542
      %v804 = vunpack.c.l.b16 %v543
      %v805 = vunpack.c.l.b16 %v544
      %v806 = vunpack.c.l.b16 %v545
      %v807 = vunpack.c.l.b16 %v546
      %v808 = vunpack.c.l.b16 %v547
      %v809 = vunpack.c.l.b16 %v548
      %v810 = vunpack.c.l.b16 %v549
      %v811 = vunpack.c.l.b16 %v550
      %v812 = vunpack.c.l.b16 %v551
      %v813 = vunpack.c.l.b16 %v552
      %v814 = vunpack.c.l.b16 %v553
      %v815 = vunpack.c.l.b16 %v554
      %v816 = vunpack.c.l.b16 %v555
      %v817 = vunpack.c.l.b16 %v556
      %v818 = vunpack.c.l.b16 %v557
      %v819 = vunpack.c.l.b16 %v558
      %v820 = vunpack.c.l.b16 %v559
      %v821 = vunpack.c.l.b16 %v560
      %v822 = vunpack.c.l.b16 %v561
      %v823 = vunpack.c.l.b16 %v562
      %v824 = vunpack.c.l.b16 %v563
      %v825 = vunpack.c.l.b16 %v564
      %v826 = vunpack.c.l.b16 %v565
      %v827 = vunpack.c.l.b16 %v566
      %v828 = vunpack.c.l.b16 %v567
      %v829 = vunpack.c.l.b16 %v568
      %v830 = vunpack.c.l.b16 %v569
      %v831 = vunpack.c.l.b16 %v570
      %v832 = vunpack.c.l.b16 %v571
      %v833 = vunpack.c.l.b16 %v572
      %v834 = vpack.c.b16 %v707, %v706
      %v835 = vpack.c.b16 %v709, %v708
      %v836 = vpack.c.b16 %v711, %v710
      %v837 = vpack.c.b16 %v713, %v712
      %v838 = vpack.c.b16 %v715, %v714
      %v839 = vpack.c.b16 %v717, %v716
      %v840 = vpack.c.b16 %v719, %v718
      %v841 = vpack.c.b16 %v721, %v720
      %v842 = vpack.c.b16 %v723, %v722
      %v843 = vpack.c.b16 %v725, %v724
      %v844 = vpack.c.b16 %v727, %v726
      %v845 = vpack.c.b16 %v729, %v728
      %v846 = vpack.c.b16 %v731, %v730
      %v847 = vpack.c.b16 %v733, %v732
      %v848 = vpack.c.b16 %v735, %v734
      %v849 = vpack.c.b16 %v737, %v736
      %v850 = vpack.c.b16 %v739, %v738
      %v851 = vpack.c.b16 %v741, %v740
      %v852 = vpack.c.b16 %v743, %v742
      %v853 = vpack.c.b16 %v745, %v744
      %v854 = vpack.c.b16 %v747, %v746
      %v855 = vpack.c.b16 %v749, %v748
      %v856 = vpack.c.b16 %v751, %v750
      %v857 = vpack.c.b16 %v753, %v752
      %v858 = vpack.c.b16 %v755, %v754
      %v859 = vpack.c.b16 %v757, %v756
      %v860 = vpack.c.b16 %v759, %v758
      %v861 = vpack.c.b16 %v761, %v760
      %v862 = vpack.c.b16 %v763, %v762
      %v863 = vpack.c.b16 %v765, %v764
      %v864 = vpack.c.b16 %v767, %v766
      %v865 = vpack.c.b16 %v769, %v768
      %v866 = vpack.c.b16 %v771, %v770
      %v867 = vpack.c.b16 %v773, %v772
      %v868 = vpack.c.b16 %v775, %v774
      %v869 = vpack.c.b16 %v777, %v776
      %v870 = vpack.c.b16 %v779, %v778
      %v871 = vpack.c.b16 %v781, %v780
      %v872 = vpack.c.b16 %v783, %v782
      %v873 = vpack.c.b16 %v785, %v784
      %v874 = vpack.c.b16 %v787, %v786
      %v875 = vpack.c.b16 %v789, %v788
      %v876 = vpack.c.b16 %v791, %v790
      %v877 = vpack.c.b16 %v793, %v792
      %v878 = vpack.c.b16 %v795, %v794
      %v879 = vpack.c.b16 %v797, %v796
      %v880 = vpack.c.b16 %v799, %v798
      %v881 = vpack.c.b16 %v801, %v800
      %v882 = vpack.c.b16 %v803, %v802
      %v883 = vpack.c.b16 %v805, %v804
      %v884 = vpack.c.b16 %v807, %v806
      %v885 = vpack.c.b16 %v809, %v808
      %v886 = vpack.c.b16 %v811, %v810
      %v887 = vpack.c.b16 %v813, %v812
      %v888 = vpack.c.b16 %v815, %v814
      %v889 = vpack.c.b16 %v817, %v816
      %v890 = vpack.c.b16 %v819, %v818
      %v891 = vpack.c.b16 %v821, %v820
      %v892 = vpack.c.b16 %v823, %v822
      %v893 = vpack.c.b16 %v825, %v824
      %v894 = vpack.c.b16 %v827, %v826
      %v895 = vpack.c.b16 %v829, %v828
      %v896 = vpack.c.b16 %v831, %v830
      %v897 = vpack.c.b16 %v833, %v832
      %962 = vmatprep.subr.bf16.mxu0 0
      %963 = vmatpush1.bf16.msra.mxu0 %v841
      %964 = vmatprep.subr.bf16.mxu0 0
      %965 = vmatpush1.bf16.msra.mxu0 %v840
      %966 = vmatprep.subr.bf16.mxu0 0
      %967 = vmatpush1.bf16.msra.mxu0 %v839
      %968 = vmatprep.subr.bf16.mxu0 0
      %969 = vmatpush1.bf16.msra.mxu0 %v838
      %970 = vmatprep.subr.bf16.mxu0 0
      %971 = vmatpush1.bf16.msra.mxu0 %v837
      %972 = vmatprep.subr.bf16.mxu0 0
      %973 = vmatpush1.bf16.msra.mxu0 %v836
      %974 = vmatprep.subr.bf16.mxu0 0
      %975 = vmatpush1.bf16.msra.mxu0 %v835
      %976 = vmatprep.subr.bf16.mxu0 0
      %977 = vmatpush1.bf16.msra.mxu0 %v834
      %978 = vmatprep.subr.bf16.mxu0 0
      %979 = vmatpush2.bf16.msra.mxu0 %v849
      %980 = vmatprep.subr.bf16.mxu0 0
      %981 = vmatpush2.bf16.msra.mxu0 %v848
      %982 = vmatprep.subr.bf16.mxu0 0
      %983 = vmatpush2.bf16.msra.mxu0 %v847
      %984 = vmatprep.subr.bf16.mxu0 0
      %985 = vmatpush2.bf16.msra.mxu0 %v846
      %986 = vmatprep.subr.bf16.mxu0 0
      %987 = vmatpush2.bf16.msra.mxu0 %v845
      %988 = vmatprep.subr.bf16.mxu0 0
      %989 = vmatpush2.bf16.msra.mxu0 %v844
      %990 = vmatprep.subr.bf16.mxu0 0
      %991 = vmatpush2.bf16.msra.mxu0 %v843
      %992 = vmatprep.subr.bf16.mxu0 0
      %993 = vmatpush2.bf16.msra.mxu0 %v842
      %994 = vmatprep.mubr.bf16.mxu0 %v382
      %995 = vmatmul.mubr.bf16.gmra.mxu0 %v381
      %v996 = vpop.f32.mrf.mxu0
      %v997 = vadd.f32 %v577, %v996
      %v998 = vpop.f32.mrf.mxu0
      %v999 = vpop.f32.mrf.mxu0
      %v1000 = vadd.f32 %v577, %v999
      %v1001 = vpop.f32.mrf.mxu0
      %1002 = vmatprep.mubr.bf16.mxu0 %v390
      %1003 = vmatmul.mubr.bf16.gmra.mxu0 %v389
      %v1004 = vpop.f32.mrf.mxu0
      %v1005 = vadd.f32 %v577, %v1004
      %v1006 = vpop.f32.mrf.mxu0
      %v1007 = vpop.f32.mrf.mxu0
      %v1008 = vadd.f32 %v577, %v1007
      %v1009 = vpop.f32.mrf.mxu0
      %1010 = vmatprep.mubr.bf16.mxu0 %v398
      %1011 = vmatmul.mubr.bf16.gmra.mxu0 %v397
      %v1012 = vpop.f32.mrf.mxu0
      %v1013 = vadd.f32 %v577, %v1012
      %v1014 = vpop.f32.mrf.mxu0
      %v1015 = vpop.f32.mrf.mxu0
      %v1016 = vadd.f32 %v577, %v1015
      %v1017 = vpop.f32.mrf.mxu0
      %1018 = vmatprep.mubr.bf16.mxu0 %v406
      %1019 = vmatmul.mubr.bf16.gmra.mxu0 %v405
      %v1020 = vpop.f32.mrf.mxu0
      %v1021 = vadd.f32 %v577, %v1020
      %v1022 = vpop.f32.mrf.mxu0
      %v1023 = vpop.f32.mrf.mxu0
      %v1024 = vadd.f32 %v577, %v1023
      %v1025 = vpop.f32.mrf.mxu0
      %1026 = vmatprep.mubr.bf16.mxu0 %v414
      %1027 = vmatmul.mubr.bf16.gmra.mxu0 %v413
      %v1028 = vpop.f32.mrf.mxu0
      %v1029 = vadd.f32 %v577, %v1028
      %v1030 = vpop.f32.mrf.mxu0
      %v1031 = vpop.f32.mrf.mxu0
      %v1032 = vadd.f32 %v577, %v1031
      %v1033 = vpop.f32.mrf.mxu0
      %1034 = vmatprep.mubr.bf16.mxu0 %v422
      %1035 = vmatmul.mubr.bf16.gmra.mxu0 %v421
      %v1036 = vpop.f32.mrf.mxu0
      %v1037 = vadd.f32 %v577, %v1036
      %v1038 = vpop.f32.mrf.mxu0
      %v1039 = vpop.f32.mrf.mxu0
      %v1040 = vadd.f32 %v577, %v1039
      %v1041 = vpop.f32.mrf.mxu0
      %1042 = vmatprep.mubr.bf16.mxu0 %v430
      %1043 = vmatmul.mubr.bf16.gmra.mxu0 %v429
      %v1044 = vpop.f32.mrf.mxu0
      %v1045 = vadd.f32 %v577, %v1044
      %v1046 = vpop.f32.mrf.mxu0
      %v1047 = vpop.f32.mrf.mxu0
      %v1048 = vadd.f32 %v577, %v1047
      %v1049 = vpop.f32.mrf.mxu0
      %1050 = vmatprep.mubr.bf16.mxu0 %v438
      %1051 = vmatmul.mubr.bf16.gmra.mxu0 %v437
      %v1052 = vpop.f32.mrf.mxu0
      %v1053 = vadd.f32 %v577, %v1052
      %v1054 = vpop.f32.mrf.mxu0
      %v1055 = vpop.f32.mrf.mxu0
      %v1056 = vadd.f32 %v577, %v1055
      %v1057 = vpop.f32.mrf.mxu0
      %1058 = vdwg.mxu0
      %1059 = vmatprep.subr.bf16.mxu0 0
      %1060 = vmatpush1.bf16.msra.mxu0 %v857
      %1061 = vmatprep.subr.bf16.mxu0 0
      %1062 = vmatpush1.bf16.msra.mxu0 %v856
      %1063 = vmatprep.subr.bf16.mxu0 0
      %1064 = vmatpush1.bf16.msra.mxu0 %v855
      %1065 = vmatprep.subr.bf16.mxu0 0
      %1066 = vmatpush1.bf16.msra.mxu0 %v854
      %1067 = vmatprep.subr.bf16.mxu0 0
      %1068 = vmatpush1.bf16.msra.mxu0 %v853
      %1069 = vmatprep.subr.bf16.mxu0 0
      %1070 = vmatpush1.bf16.msra.mxu0 %v852
      %1071 = vmatprep.subr.bf16.mxu0 0
      %1072 = vmatpush1.bf16.msra.mxu0 %v851
      %1073 = vmatprep.subr.bf16.mxu0 0
      %1074 = vmatpush1.bf16.msra.mxu0 %v850
      %1075 = vmatprep.subr.bf16.mxu0 0
      %1076 = vmatpush2.bf16.msra.mxu0 %v865
      %1077 = vmatprep.subr.bf16.mxu0 0
      %1078 = vmatpush2.bf16.msra.mxu0 %v864
      %1079 = vmatprep.subr.bf16.mxu0 0
      %1080 = vmatpush2.bf16.msra.mxu0 %v863
      %1081 = vmatprep.subr.bf16.mxu0 0
      %1082 = vmatpush2.bf16.msra.mxu0 %v862
      %1083 = vmatprep.subr.bf16.mxu0 0
      %1084 = vmatpush2.bf16.msra.mxu0 %v861
      %1085 = vmatprep.subr.bf16.mxu0 0
      %1086 = vmatpush2.bf16.msra.mxu0 %v860
      %1087 = vmatprep.subr.bf16.mxu0 0
      %1088 = vmatpush2.bf16.msra.mxu0 %v859
      %1089 = vmatprep.subr.bf16.mxu0 0
      %1090 = vmatpush2.bf16.msra.mxu0 %v858
      %1091 = vmatprep.mubr.bf16.mxu0 %v384
      %1092 = vmatmul.mubr.bf16.gmra.mxu0 %v383
      %v1093 = vpop.f32.mrf.mxu0
      %v1094 = vadd.f32 %v997, %v1093
      %v1095 = vpop.f32.mrf.mxu0
      %v1096 = vpop.f32.mrf.mxu0
      %v1097 = vadd.f32 %v1000, %v1096
      %v1098 = vpop.f32.mrf.mxu0
      %1099 = vmatprep.mubr.bf16.mxu0 %v392
      %1100 = vmatmul.mubr.bf16.gmra.mxu0 %v391
      %v1101 = vpop.f32.mrf.mxu0
      %v1102 = vadd.f32 %v1005, %v1101
      %v1103 = vpop.f32.mrf.mxu0
      %v1104 = vpop.f32.mrf.mxu0
      %v1105 = vadd.f32 %v1008, %v1104
      %v1106 = vpop.f32.mrf.mxu0
      %1107 = vmatprep.mubr.bf16.mxu0 %v400
      %1108 = vmatmul.mubr.bf16.gmra.mxu0 %v399
      %v1109 = vpop.f32.mrf.mxu0
      %v1110 = vadd.f32 %v1013, %v1109
      %v1111 = vpop.f32.mrf.mxu0
      %v1112 = vpop.f32.mrf.mxu0
      %v1113 = vadd.f32 %v1016, %v1112
      %v1114 = vpop.f32.mrf.mxu0
      %1115 = vmatprep.mubr.bf16.mxu0 %v408
      %1116 = vmatmul.mubr.bf16.gmra.mxu0 %v407
      %v1117 = vpop.f32.mrf.mxu0
      %v1118 = vadd.f32 %v1021, %v1117
      %v1119 = vpop.f32.mrf.mxu0
      %v1120 = vpop.f32.mrf.mxu0
      %v1121 = vadd.f32 %v1024, %v1120
      %v1122 = vpop.f32.mrf.mxu0
      %1123 = vmatprep.mubr.bf16.mxu0 %v416
      %1124 = vmatmul.mubr.bf16.gmra.mxu0 %v415
      %v1125 = vpop.f32.mrf.mxu0
      %v1126 = vadd.f32 %v1029, %v1125
      %v1127 = vpop.f32.mrf.mxu0
      %v1128 = vpop.f32.mrf.mxu0
      %v1129 = vadd.f32 %v1032, %v1128
      %v1130 = vpop.f32.mrf.mxu0
      %1131 = vmatprep.mubr.bf16.mxu0 %v424
      %1132 = vmatmul.mubr.bf16.gmra.mxu0 %v423
      %v1133 = vpop.f32.mrf.mxu0
      %v1134 = vadd.f32 %v1037, %v1133
      %v1135 = vpop.f32.mrf.mxu0
      %v1136 = vpop.f32.mrf.mxu0
      %v1137 = vadd.f32 %v1040, %v1136
      %v1138 = vpop.f32.mrf.mxu0
      %1139 = vmatprep.mubr.bf16.mxu0 %v432
      %1140 = vmatmul.mubr.bf16.gmra.mxu0 %v431
      %v1141 = vpop.f32.mrf.mxu0
      %v1142 = vadd.f32 %v1045, %v1141
      %v1143 = vpop.f32.mrf.mxu0
      %v1144 = vpop.f32.mrf.mxu0
      %v1145 = vadd.f32 %v1048, %v1144
      %v1146 = vpop.f32.mrf.mxu0
      %1147 = vmatprep.mubr.bf16.mxu0 %v440
      %1148 = vmatmul.mubr.bf16.gmra.mxu0 %v439
      %v1149 = vpop.f32.mrf.mxu0
      %v1150 = vadd.f32 %v1053, %v1149
      %v1151 = vpop.f32.mrf.mxu0
      %v1152 = vpop.f32.mrf.mxu0
      %v1153 = vadd.f32 %v1056, %v1152
      %v1154 = vpop.f32.mrf.mxu0
      %1155 = vdwg.mxu0
      %1156 = vmatprep.subr.bf16.mxu0 0
      %1157 = vmatpush1.bf16.msra.mxu0 %v873
      %1158 = vmatprep.subr.bf16.mxu0 0
      %1159 = vmatpush1.bf16.msra.mxu0 %v872
      %1160 = vmatprep.subr.bf16.mxu0 0
      %1161 = vmatpush1.bf16.msra.mxu0 %v871
      %1162 = vmatprep.subr.bf16.mxu0 0
      %1163 = vmatpush1.bf16.msra.mxu0 %v870
      %1164 = vmatprep.subr.bf16.mxu0 0
      %1165 = vmatpush1.bf16.msra.mxu0 %v869
      %1166 = vmatprep.subr.bf16.mxu0 0
      %1167 = vmatpush1.bf16.msra.mxu0 %v868
      %1168 = vmatprep.subr.bf16.mxu0 0
      %1169 = vmatpush1.bf16.msra.mxu0 %v867
      %1170 = vmatprep.subr.bf16.mxu0 0
      %1171 = vmatpush1.bf16.msra.mxu0 %v866
      %1172 = vmatprep.subr.bf16.mxu0 0
      %1173 = vmatpush2.bf16.msra.mxu0 %v881
      %1174 = vmatprep.subr.bf16.mxu0 0
      %1175 = vmatpush2.bf16.msra.mxu0 %v880
      %1176 = vmatprep.subr.bf16.mxu0 0
      %1177 = vmatpush2.bf16.msra.mxu0 %v879
      %1178 = vmatprep.subr.bf16.mxu0 0
      %1179 = vmatpush2.bf16.msra.mxu0 %v878
      %1180 = vmatprep.subr.bf16.mxu0 0
      %1181 = vmatpush2.bf16.msra.mxu0 %v877
      %1182 = vmatprep.subr.bf16.mxu0 0
      %1183 = vmatpush2.bf16.msra.mxu0 %v876
      %1184 = vmatprep.subr.bf16.mxu0 0
      %1185 = vmatpush2.bf16.msra.mxu0 %v875
      %1186 = vmatprep.subr.bf16.mxu0 0
      %1187 = vmatpush2.bf16.msra.mxu0 %v874
      %1188 = vmatprep.mubr.bf16.mxu0 %v386
      %1189 = vmatmul.mubr.bf16.gmra.mxu0 %v385
      %v1190 = vpop.f32.mrf.mxu0
      %v1191 = vadd.f32 %v1094, %v1190
      %v1192 = vpop.f32.mrf.mxu0
      %v1193 = vpop.f32.mrf.mxu0
      %v1194 = vadd.f32 %v1097, %v1193
      %v1195 = vpop.f32.mrf.mxu0
      %1196 = vmatprep.mubr.bf16.mxu0 %v394
      %1197 = vmatmul.mubr.bf16.gmra.mxu0 %v393
      %v1198 = vpop.f32.mrf.mxu0
      %v1199 = vadd.f32 %v1102, %v1198
      %v1200 = vpop.f32.mrf.mxu0
      %v1201 = vpop.f32.mrf.mxu0
      %v1202 = vadd.f32 %v1105, %v1201
      %v1203 = vpop.f32.mrf.mxu0
      %1204 = vmatprep.mubr.bf16.mxu0 %v402
      %1205 = vmatmul.mubr.bf16.gmra.mxu0 %v401
      %v1206 = vpop.f32.mrf.mxu0
      %v1207 = vadd.f32 %v1110, %v1206
      %v1208 = vpop.f32.mrf.mxu0
      %v1209 = vpop.f32.mrf.mxu0
      %v1210 = vadd.f32 %v1113, %v1209
      %v1211 = vpop.f32.mrf.mxu0
      %1212 = vmatprep.mubr.bf16.mxu0 %v410
      %1213 = vmatmul.mubr.bf16.gmra.mxu0 %v409
      %v1214 = vpop.f32.mrf.mxu0
      %v1215 = vadd.f32 %v1118, %v1214
      %v1216 = vpop.f32.mrf.mxu0
      %v1217 = vpop.f32.mrf.mxu0
      %v1218 = vadd.f32 %v1121, %v1217
      %v1219 = vpop.f32.mrf.mxu0
      %1220 = vmatprep.mubr.bf16.mxu0 %v418
      %1221 = vmatmul.mubr.bf16.gmra.mxu0 %v417
      %v1222 = vpop.f32.mrf.mxu0
      %v1223 = vadd.f32 %v1126, %v1222
      %v1224 = vpop.f32.mrf.mxu0
      %v1225 = vpop.f32.mrf.mxu0
      %v1226 = vadd.f32 %v1129, %v1225
      %v1227 = vpop.f32.mrf.mxu0
      %1228 = vmatprep.mubr.bf16.mxu0 %v426
      %1229 = vmatmul.mubr.bf16.gmra.mxu0 %v425
      %v1230 = vpop.f32.mrf.mxu0
      %v1231 = vadd.f32 %v1134, %v1230
      %v1232 = vpop.f32.mrf.mxu0
      %v1233 = vpop.f32.mrf.mxu0
      %v1234 = vadd.f32 %v1137, %v1233
      %v1235 = vpop.f32.mrf.mxu0
      %1236 = vmatprep.mubr.bf16.mxu0 %v434
      %1237 = vmatmul.mubr.bf16.gmra.mxu0 %v433
      %v1238 = vpop.f32.mrf.mxu0
      %v1239 = vadd.f32 %v1142, %v1238
      %v1240 = vpop.f32.mrf.mxu0
      %v1241 = vpop.f32.mrf.mxu0
      %v1242 = vadd.f32 %v1145, %v1241
      %v1243 = vpop.f32.mrf.mxu0
      %1244 = vmatprep.mubr.bf16.mxu0 %v442
      %1245 = vmatmul.mubr.bf16.gmra.mxu0 %v441
      %v1246 = vpop.f32.mrf.mxu0
      %v1247 = vadd.f32 %v1150, %v1246
      %v1248 = vpop.f32.mrf.mxu0
      %v1249 = vpop.f32.mrf.mxu0
      %v1250 = vadd.f32 %v1153, %v1249
      %v1251 = vpop.f32.mrf.mxu0
      %1252 = vdwg.mxu0
      %1253 = vmatprep.subr.bf16.mxu0 0
      %1254 = vmatpush1.bf16.msra.mxu0 %v889
      %1255 = vmatprep.subr.bf16.mxu0 0
      %1256 = vmatpush1.bf16.msra.mxu0 %v888
      %1257 = vmatprep.subr.bf16.mxu0 0
      %1258 = vmatpush1.bf16.msra.mxu0 %v887
      %1259 = vmatprep.subr.bf16.mxu0 0
      %1260 = vmatpush1.bf16.msra.mxu0 %v886
      %1261 = vmatprep.subr.bf16.mxu0 0
      %1262 = vmatpush1.bf16.msra.mxu0 %v885
      %1263 = vmatprep.subr.bf16.mxu0 0
      %1264 = vmatpush1.bf16.msra.mxu0 %v884
      %1265 = vmatprep.subr.bf16.mxu0 0
      %1266 = vmatpush1.bf16.msra.mxu0 %v883
      %1267 = vmatprep.subr.bf16.mxu0 0
      %1268 = vmatpush1.bf16.msra.mxu0 %v882
      %1269 = vmatprep.subr.bf16.mxu0 0
      %1270 = vmatpush2.bf16.msra.mxu0 %v897
      %1271 = vmatprep.subr.bf16.mxu0 0
      %1272 = vmatpush2.bf16.msra.mxu0 %v896
      %1273 = vmatprep.subr.bf16.mxu0 0
      %1274 = vmatpush2.bf16.msra.mxu0 %v895
      %1275 = vmatprep.subr.bf16.mxu0 0
      %1276 = vmatpush2.bf16.msra.mxu0 %v894
      %1277 = vmatprep.subr.bf16.mxu0 0
      %1278 = vmatpush2.bf16.msra.mxu0 %v893
      %1279 = vmatprep.subr.bf16.mxu0 0
      %1280 = vmatpush2.bf16.msra.mxu0 %v892
      %1281 = vmatprep.subr.bf16.mxu0 0
      %1282 = vmatpush2.bf16.msra.mxu0 %v891
      %1283 = vmatprep.subr.bf16.mxu0 0
      %1284 = vmatpush2.bf16.msra.mxu0 %v890
      %1285 = vmatprep.mubr.bf16.mxu0 %v388
      %1286 = vmatmul.mubr.bf16.gmra.mxu0 %v387
      %v1287 = vpop.f32.mrf.mxu0
      %v1288 = vadd.f32 %v1191, %v1287
      %v1289 = vpop.f32.mrf.mxu0
      %v1290 = vpop.f32.mrf.mxu0
      %v1291 = vadd.f32 %v1194, %v1290
      %v1292 = vpop.f32.mrf.mxu0
      %1293 = vmatprep.mubr.bf16.mxu0 %v396
      %1294 = vmatmul.mubr.bf16.gmra.mxu0 %v395
      %v1295 = vpop.f32.mrf.mxu0
      %v1296 = vadd.f32 %v1199, %v1295
      %v1297 = vpop.f32.mrf.mxu0
      %v1298 = vpop.f32.mrf.mxu0
      %v1299 = vadd.f32 %v1202, %v1298
      %v1300 = vpop.f32.mrf.mxu0
      %1301 = vmatprep.mubr.bf16.mxu0 %v404
      %1302 = vmatmul.mubr.bf16.gmra.mxu0 %v403
      %v1303 = vpop.f32.mrf.mxu0
      %v1304 = vadd.f32 %v1207, %v1303
      %v1305 = vpop.f32.mrf.mxu0
      %v1306 = vpop.f32.mrf.mxu0
      %v1307 = vadd.f32 %v1210, %v1306
      %v1308 = vpop.f32.mrf.mxu0
      %1309 = vmatprep.mubr.bf16.mxu0 %v412
      %1310 = vmatmul.mubr.bf16.gmra.mxu0 %v411
      %v1311 = vpop.f32.mrf.mxu0
      %v1312 = vadd.f32 %v1215, %v1311
      %v1313 = vpop.f32.mrf.mxu0
      %v1314 = vpop.f32.mrf.mxu0
      %v1315 = vadd.f32 %v1218, %v1314
      %v1316 = vpop.f32.mrf.mxu0
      %1317 = vmatprep.mubr.bf16.mxu0 %v420
      %1318 = vmatmul.mubr.bf16.gmra.mxu0 %v419
      %v1319 = vpop.f32.mrf.mxu0
      %v1320 = vadd.f32 %v1223, %v1319
      %v1321 = vpop.f32.mrf.mxu0
      %v1322 = vpop.f32.mrf.mxu0
      %v1323 = vadd.f32 %v1226, %v1322
      %v1324 = vpop.f32.mrf.mxu0
      %1325 = vmatprep.mubr.bf16.mxu0 %v428
      %1326 = vmatmul.mubr.bf16.gmra.mxu0 %v427
      %v1327 = vpop.f32.mrf.mxu0
      %v1328 = vadd.f32 %v1231, %v1327
      %v1329 = vpop.f32.mrf.mxu0
      %v1330 = vpop.f32.mrf.mxu0
      %v1331 = vadd.f32 %v1234, %v1330
      %v1332 = vpop.f32.mrf.mxu0
      %1333 = vmatprep.mubr.bf16.mxu0 %v436
      %1334 = vmatmul.mubr.bf16.gmra.mxu0 %v435
      %v1335 = vpop.f32.mrf.mxu0
      %v1336 = vadd.f32 %v1239, %v1335
      %v1337 = vpop.f32.mrf.mxu0
      %v1338 = vpop.f32.mrf.mxu0
      %v1339 = vadd.f32 %v1242, %v1338
      %v1340 = vpop.f32.mrf.mxu0
      %1341 = vmatprep.mubr.bf16.mxu0 %v444
      %1342 = vmatmul.mubr.bf16.gmra.mxu0 %v443
      %v1343 = vpop.f32.mrf.mxu0
      %v1344 = vadd.f32 %v1247, %v1343
      %v1345 = vpop.f32.mrf.mxu0
      %v1346 = vpop.f32.mrf.mxu0
      %v1347 = vadd.f32 %v1250, %v1346
      %v1348 = vpop.f32.mrf.mxu0
      %1349 = vdwg.mxu0
      %v1350 = vpack.c.bf16 %v1291, %v1288
      %v1351 = vpack.c.bf16 %v1299, %v1296
      %v1352 = vpack.c.bf16 %v1307, %v1304
      %v1353 = vpack.c.bf16 %v1315, %v1312
      %v1354 = vpack.c.bf16 %v1323, %v1320
      %v1355 = vpack.c.bf16 %v1331, %v1328
      %v1356 = vpack.c.bf16 %v1339, %v1336
      %v1357 = vpack.c.bf16 %v1347, %v1344
      %v1358 = vld [vmem:[%s2] sm:$0xff]
      %v1359 = vld [vmem:[%s2 + $0x8] sm:$0xff]
      %v1360 = vld [vmem:[%s2 + $0x10] sm:$0xff]
      %v1361 = vld [vmem:[%s2 + $0x18] sm:$0xff]
      %v1362 = vld [vmem:[%s2 + $0x20] sm:$0xff]
      %v1363 = vld [vmem:[%s2 + $0x28] sm:$0xff]
      %v1364 = vld [vmem:[%s2 + $0x30] sm:$0xff]
      %v1365 = vld [vmem:[%s2 + $0x38] sm:$0xff]
      %v1366 = vld [vmem:[%s2 + $0x40] sm:$0xff]
      %v1367 = vld [vmem:[%s2 + $0x48] sm:$0xff]
      %v1368 = vld [vmem:[%s2 + $0x50] sm:$0xff]
      %v1369 = vld [vmem:[%s2 + $0x58] sm:$0xff]
      %v1370 = vld [vmem:[%s2 + $0x60] sm:$0xff]
      %v1371 = vld [vmem:[%s2 + $0x68] sm:$0xff]
      %v1372 = vld [vmem:[%s2 + $0x70] sm:$0xff]
      %v1373 = vld [vmem:[%s2 + $0x78] sm:$0xff]
      %v1374 = vld [vmem:[%s2 + $0x80] sm:$0xff]
      %v1375 = vld [vmem:[%s2 + $0x88] sm:$0xff]
      %v1376 = vld [vmem:[%s2 + $0x90] sm:$0xff]
      %v1377 = vld [vmem:[%s2 + $0x98] sm:$0xff]
      %v1378 = vld [vmem:[%s2 + $0xa0] sm:$0xff]
      %v1379 = vld [vmem:[%s2 + $0xa8] sm:$0xff]
      %v1380 = vld [vmem:[%s2 + $0xb0] sm:$0xff]
      %v1381 = vld [vmem:[%s2 + $0xb8] sm:$0xff]
      %v1382 = vld [vmem:[%s2 + $0xc0] sm:$0xff]
      %v1383 = vld [vmem:[%s2 + $0xc8] sm:$0xff]
      %v1384 = vld [vmem:[%s2 + $0xd0] sm:$0xff]
      %v1385 = vld [vmem:[%s2 + $0xd8] sm:$0xff]
      %v1386 = vld [vmem:[%s2 + $0xe0] sm:$0xff]
      %v1387 = vld [vmem:[%s2 + $0xe8] sm:$0xff]
      %v1388 = vld [vmem:[%s2 + $0xf0] sm:$0xff]
      %v1389 = vld [vmem:[%s2 + $0xf8] sm:$0xff]
      %v1422 = vunpack.c.l.b16 %v1358
      %v1423 = vunpack.c.h.b16 %v1358
      %v1424 = vunpack.c.l.b16 %v1359
      %v1425 = vunpack.c.h.b16 %v1359
      %v1426 = vunpack.c.l.b16 %v1360
      %v1427 = vunpack.c.h.b16 %v1360
      %v1428 = vunpack.c.l.b16 %v1361
      %v1429 = vunpack.c.h.b16 %v1361
      %v1430 = vunpack.c.l.b16 %v1362
      %v1431 = vunpack.c.h.b16 %v1362
      %v1432 = vunpack.c.l.b16 %v1363
      %v1433 = vunpack.c.h.b16 %v1363
      %v1434 = vunpack.c.l.b16 %v1364
      %v1435 = vunpack.c.h.b16 %v1364
      %v1436 = vunpack.c.l.b16 %v1365
      %v1437 = vunpack.c.h.b16 %v1365
      %v1438 = vunpack.c.l.b16 %v1366
      %v1439 = vunpack.c.h.b16 %v1366
      %v1440 = vunpack.c.l.b16 %v1367
      %v1441 = vunpack.c.h.b16 %v1367
      %v1442 = vunpack.c.l.b16 %v1368
      %v1443 = vunpack.c.h.b16 %v1368
      %v1444 = vunpack.c.l.b16 %v1369
      %v1445 = vunpack.c.h.b16 %v1369
      %v1446 = vunpack.c.l.b16 %v1370
      %v1447 = vunpack.c.h.b16 %v1370
      %v1448 = vunpack.c.l.b16 %v1371
      %v1449 = vunpack.c.h.b16 %v1371
      %v1450 = vunpack.c.l.b16 %v1372
      %v1451 = vunpack.c.h.b16 %v1372
      %v1452 = vunpack.c.l.b16 %v1373
      %v1453 = vunpack.c.h.b16 %v1373
      %v1454 = vunpack.c.l.b16 %v1374
      %v1455 = vunpack.c.h.b16 %v1374
      %v1456 = vunpack.c.l.b16 %v1375
      %v1457 = vunpack.c.h.b16 %v1375
      %v1458 = vunpack.c.l.b16 %v1376
      %v1459 = vunpack.c.h.b16 %v1376
      %v1460 = vunpack.c.l.b16 %v1377
      %v1461 = vunpack.c.h.b16 %v1377
      %v1462 = vunpack.c.l.b16 %v1378
      %v1463 = vunpack.c.h.b16 %v1378
      %v1464 = vunpack.c.l.b16 %v1379
      %v1465 = vunpack.c.h.b16 %v1379
      %v1466 = vunpack.c.l.b16 %v1380
      %v1467 = vunpack.c.h.b16 %v1380
      %v1468 = vunpack.c.l.b16 %v1381
      %v1469 = vunpack.c.h.b16 %v1381
      %v1470 = vunpack.c.l.b16 %v1382
      %v1471 = vunpack.c.h.b16 %v1382
      %v1472 = vunpack.c.l.b16 %v1383
      %v1473 = vunpack.c.h.b16 %v1383
      %v1474 = vunpack.c.l.b16 %v1384
      %v1475 = vunpack.c.h.b16 %v1384
      %v1476 = vunpack.c.l.b16 %v1385
      %v1477 = vunpack.c.h.b16 %v1385
      %v1478 = vunpack.c.l.b16 %v1386
      %v1479 = vunpack.c.h.b16 %v1386
      %v1480 = vunpack.c.l.b16 %v1387
      %v1481 = vunpack.c.h.b16 %v1387
      %v1482 = vunpack.c.l.b16 %v1388
      %v1483 = vunpack.c.h.b16 %v1388
      %v1484 = vunpack.c.l.b16 %v1389
      %v1485 = vunpack.c.h.b16 %v1389
      %v1486 = vpack.c.b16 %v1426, %v1422
      %v1487 = vpack.c.b16 %v1427, %v1423
      %v1488 = vpack.c.b16 %v1428, %v1424
      %v1489 = vpack.c.b16 %v1429, %v1425
      %v1490 = vpack.c.b16 %v1434, %v1430
      %v1491 = vpack.c.b16 %v1435, %v1431
      %v1492 = vpack.c.b16 %v1436, %v1432
      %v1493 = vpack.c.b16 %v1437, %v1433
      %v1494 = vpack.c.b16 %v1442, %v1438
      %v1495 = vpack.c.b16 %v1443, %v1439
      %v1496 = vpack.c.b16 %v1444, %v1440
      %v1497 = vpack.c.b16 %v1445, %v1441
      %v1498 = vpack.c.b16 %v1450, %v1446
      %v1499 = vpack.c.b16 %v1451, %v1447
      %v1500 = vpack.c.b16 %v1452, %v1448
      %v1501 = vpack.c.b16 %v1453, %v1449
      %v1502 = vpack.c.b16 %v1458, %v1454
      %v1503 = vpack.c.b16 %v1459, %v1455
      %v1504 = vpack.c.b16 %v1460, %v1456
      %v1505 = vpack.c.b16 %v1461, %v1457
      %v1506 = vpack.c.b16 %v1466, %v1462
      %v1507 = vpack.c.b16 %v1467, %v1463
      %v1508 = vpack.c.b16 %v1468, %v1464
      %v1509 = vpack.c.b16 %v1469, %v1465
      %v1510 = vpack.c.b16 %v1474, %v1470
      %v1511 = vpack.c.b16 %v1475, %v1471
      %v1512 = vpack.c.b16 %v1476, %v1472
      %v1513 = vpack.c.b16 %v1477, %v1473
      %v1514 = vpack.c.b16 %v1482, %v1478
      %v1515 = vpack.c.b16 %v1483, %v1479
      %v1516 = vpack.c.b16 %v1484, %v1480
      %v1517 = vpack.c.b16 %v1485, %v1481
      %1550 = vmatprep.subr.bf16.mxu0 %v1515
      %1551 = vmatpush1.bf16.msra.mxu0 %v1514
      %1552 = vmatprep.subr.bf16.mxu0 %v1511
      %1553 = vmatpush1.bf16.msra.mxu0 %v1510
      %1554 = vmatprep.subr.bf16.mxu0 %v1507
      %1555 = vmatpush1.bf16.msra.mxu0 %v1506
      %1556 = vmatprep.subr.bf16.mxu0 %v1503
      %1557 = vmatpush1.bf16.msra.mxu0 %v1502
      %1558 = vmatprep.subr.bf16.mxu0 %v1499
      %1559 = vmatpush1.bf16.msra.mxu0 %v1498
      %1560 = vmatprep.subr.bf16.mxu0 %v1495
      %1561 = vmatpush1.bf16.msra.mxu0 %v1494
      %1562 = vmatprep.subr.bf16.mxu0 %v1491
      %1563 = vmatpush1.bf16.msra.mxu0 %v1490
      %1564 = vmatprep.subr.bf16.mxu0 %v1487
      %1565 = vmatpush1.bf16.msra.mxu0 %v1486
      %1566 = vmatprep.subr.bf16.mxu0 0
      %1567 = vmatpush2.bf16.msra.mxu0 0
      %1568 = vmatprep.subr.bf16.mxu0 0
      %1569 = vmatpush2.bf16.msra.mxu0 0
      %1570 = vmatprep.subr.bf16.mxu0 0
      %1571 = vmatpush2.bf16.msra.mxu0 0
      %1572 = vmatprep.subr.bf16.mxu0 0
      %1573 = vmatpush2.bf16.msra.mxu0 0
      %1574 = vmatprep.subr.bf16.mxu0 0
      %1575 = vmatpush2.bf16.msra.mxu0 0
      %1576 = vmatprep.subr.bf16.mxu0 0
      %1577 = vmatpush2.bf16.msra.mxu0 0
      %1578 = vmatprep.subr.bf16.mxu0 0
      %1579 = vmatpush2.bf16.msra.mxu0 0
      %1580 = vmatprep.subr.bf16.mxu0 0
      %1581 = vmatpush2.bf16.msra.mxu0 0
      %1582 = vmatprep.mubr.bf16.mxu0 0
      %1583 = vmatmul.mubr.bf16.gmra.mxu0 %v1350
      %v1584 = vpop.f32.mrf.mxu0
      %v1585 = vadd.f32 0.0, %v1584
      %v1586 = vpop.f32.mrf.mxu0
      %v1587 = vadd.f32 0.0, %v1586
      %v1588 = vpop.f32.mrf.mxu0
      %v1589 = vadd.f32 0.0, %v1588
      %v1590 = vpop.f32.mrf.mxu0
      %v1591 = vadd.f32 0.0, %v1590
      %1592 = vmatprep.mubr.bf16.mxu0 0
      %1593 = vmatmul.mubr.bf16.gmra.mxu0 %v1351
      %v1594 = vpop.f32.mrf.mxu0
      %v1595 = vadd.f32 0.0, %v1594
      %v1596 = vpop.f32.mrf.mxu0
      %v1597 = vadd.f32 0.0, %v1596
      %v1598 = vpop.f32.mrf.mxu0
      %v1599 = vadd.f32 0.0, %v1598
      %v1600 = vpop.f32.mrf.mxu0
      %v1601 = vadd.f32 0.0, %v1600
      %1602 = vmatprep.mubr.bf16.mxu0 0
      %1603 = vmatmul.mubr.bf16.gmra.mxu0 %v1352
      %v1604 = vpop.f32.mrf.mxu0
      %v1605 = vadd.f32 0.0, %v1604
      %v1606 = vpop.f32.mrf.mxu0
      %v1607 = vadd.f32 0.0, %v1606
      %v1608 = vpop.f32.mrf.mxu0
      %v1609 = vadd.f32 0.0, %v1608
      %v1610 = vpop.f32.mrf.mxu0
      %v1611 = vadd.f32 0.0, %v1610
      %1612 = vmatprep.mubr.bf16.mxu0 0
      %1613 = vmatmul.mubr.bf16.gmra.mxu0 %v1353
      %v1614 = vpop.f32.mrf.mxu0
      %v1615 = vadd.f32 0.0, %v1614
      %v1616 = vpop.f32.mrf.mxu0
      %v1617 = vadd.f32 0.0, %v1616
      %v1618 = vpop.f32.mrf.mxu0
      %v1619 = vadd.f32 0.0, %v1618
      %v1620 = vpop.f32.mrf.mxu0
      %v1621 = vadd.f32 0.0, %v1620
      %1622 = vmatprep.mubr.bf16.mxu0 0
      %1623 = vmatmul.mubr.bf16.gmra.mxu0 %v1354
      %v1624 = vpop.f32.mrf.mxu0
      %v1625 = vadd.f32 0.0, %v1624
      %v1626 = vpop.f32.mrf.mxu0
      %v1627 = vadd.f32 0.0, %v1626
      %v1628 = vpop.f32.mrf.mxu0
      %v1629 = vadd.f32 0.0, %v1628
      %v1630 = vpop.f32.mrf.mxu0
      %v1631 = vadd.f32 0.0, %v1630
      %1632 = vmatprep.mubr.bf16.mxu0 0
      %1633 = vmatmul.mubr.bf16.gmra.mxu0 %v1355
      %v1634 = vpop.f32.mrf.mxu0
      %v1635 = vadd.f32 0.0, %v1634
      %v1636 = vpop.f32.mrf.mxu0
      %v1637 = vadd.f32 0.0, %v1636
      %v1638 = vpop.f32.mrf.mxu0
      %v1639 = vadd.f32 0.0, %v1638
      %v1640 = vpop.f32.mrf.mxu0
      %v1641 = vadd.f32 0.0, %v1640
      %1642 = vmatprep.mubr.bf16.mxu0 0
      %1643 = vmatmul.mubr.bf16.gmra.mxu0 %v1356
      %v1644 = vpop.f32.mrf.mxu0
      %v1645 = vadd.f32 0.0, %v1644
      %v1646 = vpop.f32.mrf.mxu0
      %v1647 = vadd.f32 0.0, %v1646
      %v1648 = vpop.f32.mrf.mxu0
      %v1649 = vadd.f32 0.0, %v1648
      %v1650 = vpop.f32.mrf.mxu0
      %v1651 = vadd.f32 0.0, %v1650
      %1652 = vmatprep.mubr.bf16.mxu0 0
      %1653 = vmatmul.mubr.bf16.gmra.mxu0 %v1357
      %v1654 = vpop.f32.mrf.mxu0
      %v1655 = vadd.f32 0.0, %v1654
      %v1656 = vpop.f32.mrf.mxu0
      %v1657 = vadd.f32 0.0, %v1656
      %v1658 = vpop.f32.mrf.mxu0
      %v1659 = vadd.f32 0.0, %v1658
      %v1660 = vpop.f32.mrf.mxu0
      %v1661 = vadd.f32 0.0, %v1660
      %1662 = vdwg.mxu0
      %1663 = vmatprep.subr.bf16.mxu0 %v1517
      %1664 = vmatpush1.bf16.msra.mxu0 %v1516
      %1665 = vmatprep.subr.bf16.mxu0 %v1513
      %1666 = vmatpush1.bf16.msra.mxu0 %v1512
      %1667 = vmatprep.subr.bf16.mxu0 %v1509
      %1668 = vmatpush1.bf16.msra.mxu0 %v1508
      %1669 = vmatprep.subr.bf16.mxu0 %v1505
      %1670 = vmatpush1.bf16.msra.mxu0 %v1504
      %1671 = vmatprep.subr.bf16.mxu0 %v1501
      %1672 = vmatpush1.bf16.msra.mxu0 %v1500
      %1673 = vmatprep.subr.bf16.mxu0 %v1497
      %1674 = vmatpush1.bf16.msra.mxu0 %v1496
      %1675 = vmatprep.subr.bf16.mxu0 %v1493
      %1676 = vmatpush1.bf16.msra.mxu0 %v1492
      %1677 = vmatprep.subr.bf16.mxu0 %v1489
      %1678 = vmatpush1.bf16.msra.mxu0 %v1488
      %1679 = vmatprep.subr.bf16.mxu0 0
      %1680 = vmatpush2.bf16.msra.mxu0 0
      %1681 = vmatprep.subr.bf16.mxu0 0
      %1682 = vmatpush2.bf16.msra.mxu0 0
      %1683 = vmatprep.subr.bf16.mxu0 0
      %1684 = vmatpush2.bf16.msra.mxu0 0
      %1685 = vmatprep.subr.bf16.mxu0 0
      %1686 = vmatpush2.bf16.msra.mxu0 0
      %1687 = vmatprep.subr.bf16.mxu0 0
      %1688 = vmatpush2.bf16.msra.mxu0 0
      %1689 = vmatprep.subr.bf16.mxu0 0
      %1690 = vmatpush2.bf16.msra.mxu0 0
      %1691 = vmatprep.subr.bf16.mxu0 0
      %1692 = vmatpush2.bf16.msra.mxu0 0
      %1693 = vmatprep.subr.bf16.mxu0 0
      %1694 = vmatpush2.bf16.msra.mxu0 0
      %1695 = vmatprep.mubr.bf16.mxu0 0
      %1696 = vmatmul.mubr.bf16.gmra.mxu0 %v1350
      %v1697 = vpop.f32.mrf.mxu0
      %v1698 = vadd.f32 0.0, %v1697
      %v1699 = vpop.f32.mrf.mxu0
      %v1700 = vadd.f32 0.0, %v1699
      %v1701 = vpop.f32.mrf.mxu0
      %v1702 = vadd.f32 0.0, %v1701
      %v1703 = vpop.f32.mrf.mxu0
      %v1704 = vadd.f32 0.0, %v1703
      %1705 = vmatprep.mubr.bf16.mxu0 0
      %1706 = vmatmul.mubr.bf16.gmra.mxu0 %v1351
      %v1707 = vpop.f32.mrf.mxu0
      %v1708 = vadd.f32 0.0, %v1707
      %v1709 = vpop.f32.mrf.mxu0
      %v1710 = vadd.f32 0.0, %v1709
      %v1711 = vpop.f32.mrf.mxu0
      %v1712 = vadd.f32 0.0, %v1711
      %v1713 = vpop.f32.mrf.mxu0
      %v1714 = vadd.f32 0.0, %v1713
      %1715 = vmatprep.mubr.bf16.mxu0 0
      %1716 = vmatmul.mubr.bf16.gmra.mxu0 %v1352
      %v1717 = vpop.f32.mrf.mxu0
      %v1718 = vadd.f32 0.0, %v1717
      %v1719 = vpop.f32.mrf.mxu0
      %v1720 = vadd.f32 0.0, %v1719
      %v1721 = vpop.f32.mrf.mxu0
      %v1722 = vadd.f32 0.0, %v1721
      %v1723 = vpop.f32.mrf.mxu0
      %v1724 = vadd.f32 0.0, %v1723
      %1725 = vmatprep.mubr.bf16.mxu0 0
      %1726 = vmatmul.mubr.bf16.gmra.mxu0 %v1353
      %v1727 = vpop.f32.mrf.mxu0
      %v1728 = vadd.f32 0.0, %v1727
      %v1729 = vpop.f32.mrf.mxu0
      %v1730 = vadd.f32 0.0, %v1729
      %v1731 = vpop.f32.mrf.mxu0
      %v1732 = vadd.f32 0.0, %v1731
      %v1733 = vpop.f32.mrf.mxu0
      %v1734 = vadd.f32 0.0, %v1733
      %1735 = vmatprep.mubr.bf16.mxu0 0
      %1736 = vmatmul.mubr.bf16.gmra.mxu0 %v1354
      %v1737 = vpop.f32.mrf.mxu0
      %v1738 = vadd.f32 0.0, %v1737
      %v1739 = vpop.f32.mrf.mxu0
      %v1740 = vadd.f32 0.0, %v1739
      %v1741 = vpop.f32.mrf.mxu0
      %v1742 = vadd.f32 0.0, %v1741
      %v1743 = vpop.f32.mrf.mxu0
      %v1744 = vadd.f32 0.0, %v1743
      %1745 = vmatprep.mubr.bf16.mxu0 0
      %1746 = vmatmul.mubr.bf16.gmra.mxu0 %v1355
      %v1747 = vpop.f32.mrf.mxu0
      %v1748 = vadd.f32 0.0, %v1747
      %v1749 = vpop.f32.mrf.mxu0
      %v1750 = vadd.f32 0.0, %v1749
      %v1751 = vpop.f32.mrf.mxu0
      %v1752 = vadd.f32 0.0, %v1751
      %v1753 = vpop.f32.mrf.mxu0
      %v1754 = vadd.f32 0.0, %v1753
      %1755 = vmatprep.mubr.bf16.mxu0 0
      %1756 = vmatmul.mubr.bf16.gmra.mxu0 %v1356
      %v1757 = vpop.f32.mrf.mxu0
      %v1758 = vadd.f32 0.0, %v1757
      %v1759 = vpop.f32.mrf.mxu0
      %v1760 = vadd.f32 0.0, %v1759
      %v1761 = vpop.f32.mrf.mxu0
      %v1762 = vadd.f32 0.0, %v1761
      %v1763 = vpop.f32.mrf.mxu0
      %v1764 = vadd.f32 0.0, %v1763
      %1765 = vmatprep.mubr.bf16.mxu0 0
      %1766 = vmatmul.mubr.bf16.gmra.mxu0 %v1357
      %v1767 = vpop.f32.mrf.mxu0
      %v1768 = vadd.f32 0.0, %v1767
      %v1769 = vpop.f32.mrf.mxu0
      %v1770 = vadd.f32 0.0, %v1769
      %v1771 = vpop.f32.mrf.mxu0
      %v1772 = vadd.f32 0.0, %v1771
      %v1773 = vpop.f32.mrf.mxu0
      %v1774 = vadd.f32 0.0, %v1773
      %1775 = vdwg.mxu0
      %1776 = vmatprep.subr.mxu0 %v1661
      %1777 = vmatpush1.msra.mxu0 %v1659
      %1778 = vmatprep.subr.mxu0 %v1657
      %1779 = vmatpush1.msra.mxu0 %v1655
      %1780 = vmatprep.subr.mxu0 %v1651
      %1781 = vmatpush1.msra.mxu0 %v1649
      %1782 = vmatprep.subr.mxu0 %v1647
      %1783 = vmatpush1.msra.mxu0 %v1645
      %1784 = vmatprep.subr.mxu0 %v1641
      %1785 = vmatpush1.msra.mxu0 %v1639
      %1786 = vmatprep.subr.mxu0 %v1637
      %1787 = vmatpush1.msra.mxu0 %v1635
      %1788 = vmatprep.subr.mxu0 %v1631
      %1789 = vmatpush1.msra.mxu0 %v1629
      %1790 = vmatprep.subr.mxu0 %v1627
      %1791 = vmatpush1.msra.mxu0 %v1625
      %1792 = vmatprep.subr.mxu0 %v1621
      %1793 = vmatpush1.msra.mxu0 %v1619
      %1794 = vmatprep.subr.mxu0 %v1617
      %1795 = vmatpush1.msra.mxu0 %v1615
      %1796 = vmatprep.subr.mxu0 %v1611
      %1797 = vmatpush1.msra.mxu0 %v1609
      %1798 = vmatprep.subr.mxu0 %v1607
      %1799 = vmatpush1.msra.mxu0 %v1605
      %1800 = vmatprep.subr.mxu0 %v1601
      %1801 = vmatpush1.msra.mxu0 %v1599
      %1802 = vmatprep.subr.mxu0 %v1597
      %1803 = vmatpush1.msra.mxu0 %v1595
      %1804 = vmatprep.subr.mxu0 %v1591
      %1805 = vmatpush1.msra.mxu0 %v1589
      %1806 = vmatprep.subr.mxu0 %v1587
      %1807 = vmatpush1.msra.mxu0 %v1585
      %1808 = vmatprep.subr.mxu0 0.0
      %1809 = vmatpush2.msra.mxu0 0.0
      %1810 = vmatprep.subr.mxu0 0.0
      %1811 = vmatpush2.msra.mxu0 0.0
      %1812 = vmatprep.subr.mxu0 0.0
      %1813 = vmatpush2.msra.mxu0 0.0
      %1814 = vmatprep.subr.mxu0 0.0
      %1815 = vmatpush2.msra.mxu0 0.0
      %1816 = vmatprep.subr.mxu0 0.0
      %1817 = vmatpush2.msra.mxu0 0.0
      %1818 = vmatprep.subr.mxu0 0.0
      %1819 = vmatpush2.msra.mxu0 0.0
      %1820 = vmatprep.subr.mxu0 0.0
      %1821 = vmatpush2.msra.mxu0 0.0
      %1822 = vmatprep.subr.mxu0 0.0
      %1823 = vmatpush2.msra.mxu0 0.0
      %1824 = vmatprep.subr.mxu0 0.0
      %1825 = vmatpush2.msra.mxu0 0.0
      %1826 = vmatprep.subr.mxu0 0.0
      %1827 = vmatpush2.msra.mxu0 0.0
      %1828 = vmatprep.subr.mxu0 0.0
      %1829 = vmatpush2.msra.mxu0 0.0
      %1830 = vmatprep.subr.mxu0 0.0
      %1831 = vmatpush2.msra.mxu0 0.0
      %1832 = vmatprep.subr.mxu0 0.0
      %1833 = vmatpush2.msra.mxu0 0.0
      %1834 = vmatprep.subr.mxu0 0.0
      %1835 = vmatpush2.msra.mxu0 0.0
      %1836 = vmatprep.subr.mxu0 0.0
      %1837 = vmatpush2.msra.mxu0 0.0
      %1838 = vmatprep.subr.mxu0 0.0
      %1839 = vmatpush2.msra.mxu0 0.0
      %1840 = vmatprep.mubr.f32.mxu0 0.0
      %1841 = vmatmul.mubr.f32.gmra.mxu0 1.0
      %v1842 = vpop.f32.mrf.mxu0
      %v1843 = vadd.f32 0.0, %v1842
      %v1844 = vpop.f32.mrf.mxu0
      %v1845 = vadd.f32 0.0, %v1844
      %1846 = vdwg.mxu0
      %1847 = vmatprep.subr.mxu0 %v1774
      %1848 = vmatpush1.msra.mxu0 %v1772
      %1849 = vmatprep.subr.mxu0 %v1770
      %1850 = vmatpush1.msra.mxu0 %v1768
      %1851 = vmatprep.subr.mxu0 %v1764
      %1852 = vmatpush1.msra.mxu0 %v1762
      %1853 = vmatprep.subr.mxu0 %v1760
      %1854 = vmatpush1.msra.mxu0 %v1758
      %1855 = vmatprep.subr.mxu0 %v1754
      %1856 = vmatpush1.msra.mxu0 %v1752
      %1857 = vmatprep.subr.mxu0 %v1750
      %1858 = vmatpush1.msra.mxu0 %v1748
      %1859 = vmatprep.subr.mxu0 %v1744
      %1860 = vmatpush1.msra.mxu0 %v1742
      %1861 = vmatprep.subr.mxu0 %v1740
      %1862 = vmatpush1.msra.mxu0 %v1738
      %1863 = vmatprep.subr.mxu0 %v1734
      %1864 = vmatpush1.msra.mxu0 %v1732
      %1865 = vmatprep.subr.mxu0 %v1730
      %1866 = vmatpush1.msra.mxu0 %v1728
      %1867 = vmatprep.subr.mxu0 %v1724
      %1868 = vmatpush1.msra.mxu0 %v1722
      %1869 = vmatprep.subr.mxu0 %v1720
      %1870 = vmatpush1.msra.mxu0 %v1718
      %1871 = vmatprep.subr.mxu0 %v1714
      %1872 = vmatpush1.msra.mxu0 %v1712
      %1873 = vmatprep.subr.mxu0 %v1710
      %1874 = vmatpush1.msra.mxu0 %v1708
      %1875 = vmatprep.subr.mxu0 %v1704
      %1876 = vmatpush1.msra.mxu0 %v1702
      %1877 = vmatprep.subr.mxu0 %v1700
      %1878 = vmatpush1.msra.mxu0 %v1698
      %1879 = vmatprep.subr.mxu0 0.0
      %1880 = vmatpush2.msra.mxu0 0.0
      %1881 = vmatprep.subr.mxu0 0.0
      %1882 = vmatpush2.msra.mxu0 0.0
      %1883 = vmatprep.subr.mxu0 0.0
      %1884 = vmatpush2.msra.mxu0 0.0
      %1885 = vmatprep.subr.mxu0 0.0
      %1886 = vmatpush2.msra.mxu0 0.0
      %1887 = vmatprep.subr.mxu0 0.0
      %1888 = vmatpush2.msra.mxu0 0.0
      %1889 = vmatprep.subr.mxu0 0.0
      %1890 = vmatpush2.msra.mxu0 0.0
      %1891 = vmatprep.subr.mxu0 0.0
      %1892 = vmatpush2.msra.mxu0 0.0
      %1893 = vmatprep.subr.mxu0 0.0
      %1894 = vmatpush2.msra.mxu0 0.0
      %1895 = vmatprep.subr.mxu0 0.0
      %1896 = vmatpush2.msra.mxu0 0.0
      %1897 = vmatprep.subr.mxu0 0.0
      %1898 = vmatpush2.msra.mxu0 0.0
      %1899 = vmatprep.subr.mxu0 0.0
      %1900 = vmatpush2.msra.mxu0 0.0
      %1901 = vmatprep.subr.mxu0 0.0
      %1902 = vmatpush2.msra.mxu0 0.0
      %1903 = vmatprep.subr.mxu0 0.0
      %1904 = vmatpush2.msra.mxu0 0.0
      %1905 = vmatprep.subr.mxu0 0.0
      %1906 = vmatpush2.msra.mxu0 0.0
      %1907 = vmatprep.subr.mxu0 0.0
      %1908 = vmatpush2.msra.mxu0 0.0
      %1909 = vmatprep.subr.mxu0 0.0
      %1910 = vmatpush2.msra.mxu0 0.0
      %1911 = vmatprep.mubr.f32.mxu0 0.0
      %1912 = vmatmul.mubr.f32.gmra.mxu0 1.0
      %v1913 = vpop.f32.mrf.mxu0
      %v1914 = vadd.f32 0.0, %v1913
      %v1915 = vpop.f32.mrf.mxu0
      %v1916 = vadd.f32 0.0, %v1915
      %1917 = vdwg.mxu0
      %v1918 = vmul.f32 %v1843, 0.0078125
      %v1919 = vmul.f32 %v1845, 0.0078125
      %v1920 = vmul.f32 %v1914, 0.0078125
      %v1921 = vmul.f32 %v1916, 0.0078125
      %v1922 = vlaneseq
      %v1923 = vshrl.u32 %v1922, 7
      %v1924 = vsub.s32 0, %v1923
      %v1925 = vrot.slane %v1918, %v1924
      %v1926 = vlaneseq
      %v1927 = vshrl.u32 %v1926, 7
      %v1928 = vsub.s32 0, %v1927
      %v1929 = vrot.slane %v1919, %v1928
      %v1930 = vlaneseq
      %v1931 = vshrl.u32 %v1930, 7
      %v1932 = vsub.s32 0, %v1931
      %v1933 = vrot.slane %v1920, %v1932
      %v1934 = vlaneseq
      %v1935 = vshrl.u32 %v1934, 7
      %v1936 = vsub.s32 0, %v1935
      %v1937 = vrot.slane %v1921, %v1936
      %v1938 = vsub.f32 %v1585, %v1925
      %v1939 = vsub.f32 %v1587, %v1929
      %v1940 = vsub.f32 %v1698, %v1933
      %v1941 = vsub.f32 %v1700, %v1937
      %v1942 = vsub.f32 %v1589, %v1925
      %v1943 = vsub.f32 %v1591, %v1929
      %v1944 = vsub.f32 %v1702, %v1933
      %v1945 = vsub.f32 %v1704, %v1937
      %v1946 = vsub.f32 %v1595, %v1925
      %v1947 = vsub.f32 %v1597, %v1929
      %v1948 = vsub.f32 %v1708, %v1933
      %v1949 = vsub.f32 %v1710, %v1937
      %v1950 = vsub.f32 %v1599, %v1925
      %v1951 = vsub.f32 %v1601, %v1929
      %v1952 = vsub.f32 %v1712, %v1933
      %v1953 = vsub.f32 %v1714, %v1937
      %v1954 = vsub.f32 %v1605, %v1925
      %v1955 = vsub.f32 %v1607, %v1929
      %v1956 = vsub.f32 %v1718, %v1933
      %v1957 = vsub.f32 %v1720, %v1937
      %v1958 = vsub.f32 %v1609, %v1925
      %v1959 = vsub.f32 %v1611, %v1929
      %v1960 = vsub.f32 %v1722, %v1933
      %v1961 = vsub.f32 %v1724, %v1937
      %v1962 = vsub.f32 %v1615, %v1925
      %v1963 = vsub.f32 %v1617, %v1929
      %v1964 = vsub.f32 %v1728, %v1933
      %v1965 = vsub.f32 %v1730, %v1937
      %v1966 = vsub.f32 %v1619, %v1925
      %v1967 = vsub.f32 %v1621, %v1929
      %v1968 = vsub.f32 %v1732, %v1933
      %v1969 = vsub.f32 %v1734, %v1937
      %v1970 = vsub.f32 %v1625, %v1925
      %v1971 = vsub.f32 %v1627, %v1929
      %v1972 = vsub.f32 %v1738, %v1933
      %v1973 = vsub.f32 %v1740, %v1937
      %v1974 = vsub.f32 %v1629, %v1925
      %v1975 = vsub.f32 %v1631, %v1929
      %v1976 = vsub.f32 %v1742, %v1933
      %v1977 = vsub.f32 %v1744, %v1937
      %v1978 = vsub.f32 %v1635, %v1925
      %v1979 = vsub.f32 %v1637, %v1929
      %v1980 = vsub.f32 %v1748, %v1933
      %v1981 = vsub.f32 %v1750, %v1937
      %v1982 = vsub.f32 %v1639, %v1925
      %v1983 = vsub.f32 %v1641, %v1929
      %v1984 = vsub.f32 %v1752, %v1933
      %v1985 = vsub.f32 %v1754, %v1937
      %v1986 = vsub.f32 %v1645, %v1925
      %v1987 = vsub.f32 %v1647, %v1929
      %v1988 = vsub.f32 %v1758, %v1933
      %v1989 = vsub.f32 %v1760, %v1937
      %v1990 = vsub.f32 %v1649, %v1925
      %v1991 = vsub.f32 %v1651, %v1929
      %v1992 = vsub.f32 %v1762, %v1933
      %v1993 = vsub.f32 %v1764, %v1937
      %v1994 = vsub.f32 %v1655, %v1925
      %v1995 = vsub.f32 %v1657, %v1929
      %v1996 = vsub.f32 %v1768, %v1933
      %v1997 = vsub.f32 %v1770, %v1937
      %v1998 = vsub.f32 %v1659, %v1925
      %v1999 = vsub.f32 %v1661, %v1929
      %v2000 = vsub.f32 %v1772, %v1933
      %v2001 = vsub.f32 %v1774, %v1937
      %v2002 = vmul.f32 %v1938, %v1938
      %v2003 = vmul.f32 %v1939, %v1939
      %v2004 = vmul.f32 %v1940, %v1940
      %v2005 = vmul.f32 %v1941, %v1941
      %v2006 = vmul.f32 %v1942, %v1942
      %v2007 = vmul.f32 %v1943, %v1943
      %v2008 = vmul.f32 %v1944, %v1944
      %v2009 = vmul.f32 %v1945, %v1945
      %v2010 = vmul.f32 %v1946, %v1946
      %v2011 = vmul.f32 %v1947, %v1947
      %v2012 = vmul.f32 %v1948, %v1948
      %v2013 = vmul.f32 %v1949, %v1949
      %v2014 = vmul.f32 %v1950, %v1950
      %v2015 = vmul.f32 %v1951, %v1951
      %v2016 = vmul.f32 %v1952, %v1952
      %v2017 = vmul.f32 %v1953, %v1953
      %v2018 = vmul.f32 %v1954, %v1954
      %v2019 = vmul.f32 %v1955, %v1955
      %v2020 = vmul.f32 %v1956, %v1956
      %v2021 = vmul.f32 %v1957, %v1957
      %v2022 = vmul.f32 %v1958, %v1958
      %v2023 = vmul.f32 %v1959, %v1959
      %v2024 = vmul.f32 %v1960, %v1960
      %v2025 = vmul.f32 %v1961, %v1961
      %v2026 = vmul.f32 %v1962, %v1962
      %v2027 = vmul.f32 %v1963, %v1963
      %v2028 = vmul.f32 %v1964, %v1964
      %v2029 = vmul.f32 %v1965, %v1965
      %v2030 = vmul.f32 %v1966, %v1966
      %v2031 = vmul.f32 %v1967, %v1967
      %v2032 = vmul.f32 %v1968, %v1968
      %v2033 = vmul.f32 %v1969, %v1969
      %v2034 = vmul.f32 %v1970, %v1970
      %v2035 = vmul.f32 %v1971, %v1971
      %v2036 = vmul.f32 %v1972, %v1972
      %v2037 = vmul.f32 %v1973, %v1973
      %v2038 = vmul.f32 %v1974, %v1974
      %v2039 = vmul.f32 %v1975, %v1975
      %v2040 = vmul.f32 %v1976, %v1976
      %v2041 = vmul.f32 %v1977, %v1977
      %v2042 = vmul.f32 %v1978, %v1978
      %v2043 = vmul.f32 %v1979, %v1979
      %v2044 = vmul.f32 %v1980, %v1980
      %v2045 = vmul.f32 %v1981, %v1981
      %v2046 = vmul.f32 %v1982, %v1982
      %v2047 = vmul.f32 %v1983, %v1983
      %v2048 = vmul.f32 %v1984, %v1984
      %v2049 = vmul.f32 %v1985, %v1985
      %v2050 = vmul.f32 %v1986, %v1986
      %v2051 = vmul.f32 %v1987, %v1987
      %v2052 = vmul.f32 %v1988, %v1988
      %v2053 = vmul.f32 %v1989, %v1989
      %v2054 = vmul.f32 %v1990, %v1990
      %v2055 = vmul.f32 %v1991, %v1991
      %v2056 = vmul.f32 %v1992, %v1992
      %v2057 = vmul.f32 %v1993, %v1993
      %v2058 = vmul.f32 %v1994, %v1994
      %v2059 = vmul.f32 %v1995, %v1995
      %v2060 = vmul.f32 %v1996, %v1996
      %v2061 = vmul.f32 %v1997, %v1997
      %v2062 = vmul.f32 %v1998, %v1998
      %v2063 = vmul.f32 %v1999, %v1999
      %v2064 = vmul.f32 %v2000, %v2000
      %v2065 = vmul.f32 %v2001, %v2001
      %2066 = vmatprep.subr.mxu0 %v2063
      %2067 = vmatpush1.msra.mxu0 %v2062
      %2068 = vmatprep.subr.mxu0 %v2059
      %2069 = vmatpush1.msra.mxu0 %v2058
      %2070 = vmatprep.subr.mxu0 %v2055
      %2071 = vmatpush1.msra.mxu0 %v2054
      %2072 = vmatprep.subr.mxu0 %v2051
      %2073 = vmatpush1.msra.mxu0 %v2050
      %2074 = vmatprep.subr.mxu0 %v2047
      %2075 = vmatpush1.msra.mxu0 %v2046
      %2076 = vmatprep.subr.mxu0 %v2043
      %2077 = vmatpush1.msra.mxu0 %v2042
      %2078 = vmatprep.subr.mxu0 %v2039
      %2079 = vmatpush1.msra.mxu0 %v2038
      %2080 = vmatprep.subr.mxu0 %v2035
      %2081 = vmatpush1.msra.mxu0 %v2034
      %2082 = vmatprep.subr.mxu0 %v2031
      %2083 = vmatpush1.msra.mxu0 %v2030
      %2084 = vmatprep.subr.mxu0 %v2027
      %2085 = vmatpush1.msra.mxu0 %v2026
      %2086 = vmatprep.subr.mxu0 %v2023
      %2087 = vmatpush1.msra.mxu0 %v2022
      %2088 = vmatprep.subr.mxu0 %v2019
      %2089 = vmatpush1.msra.mxu0 %v2018
      %2090 = vmatprep.subr.mxu0 %v2015
      %2091 = vmatpush1.msra.mxu0 %v2014
      %2092 = vmatprep.subr.mxu0 %v2011
      %2093 = vmatpush1.msra.mxu0 %v2010
      %2094 = vmatprep.subr.mxu0 %v2007
      %2095 = vmatpush1.msra.mxu0 %v2006
      %2096 = vmatprep.subr.mxu0 %v2003
      %2097 = vmatpush1.msra.mxu0 %v2002
      %2098 = vmatprep.subr.mxu0 0.0
      %2099 = vmatpush2.msra.mxu0 0.0
      %2100 = vmatprep.subr.mxu0 0.0
      %2101 = vmatpush2.msra.mxu0 0.0
      %2102 = vmatprep.subr.mxu0 0.0
      %2103 = vmatpush2.msra.mxu0 0.0
      %2104 = vmatprep.subr.mxu0 0.0
      %2105 = vmatpush2.msra.mxu0 0.0
      %2106 = vmatprep.subr.mxu0 0.0
      %2107 = vmatpush2.msra.mxu0 0.0
      %2108 = vmatprep.subr.mxu0 0.0
      %2109 = vmatpush2.msra.mxu0 0.0
      %2110 = vmatprep.subr.mxu0 0.0
      %2111 = vmatpush2.msra.mxu0 0.0
      %2112 = vmatprep.subr.mxu0 0.0
      %2113 = vmatpush2.msra.mxu0 0.0
      %2114 = vmatprep.subr.mxu0 0.0
      %2115 = vmatpush2.msra.mxu0 0.0
      %2116 = vmatprep.subr.mxu0 0.0
      %2117 = vmatpush2.msra.mxu0 0.0
      %2118 = vmatprep.subr.mxu0 0.0
      %2119 = vmatpush2.msra.mxu0 0.0
      %2120 = vmatprep.subr.mxu0 0.0
      %2121 = vmatpush2.msra.mxu0 0.0
      %2122 = vmatprep.subr.mxu0 0.0
      %2123 = vmatpush2.msra.mxu0 0.0
      %2124 = vmatprep.subr.mxu0 0.0
      %2125 = vmatpush2.msra.mxu0 0.0
      %2126 = vmatprep.subr.mxu0 0.0
      %2127 = vmatpush2.msra.mxu0 0.0
      %2128 = vmatprep.subr.mxu0 0.0
      %2129 = vmatpush2.msra.mxu0 0.0
      %2130 = vmatprep.mubr.f32.mxu0 0.0
      %2131 = vmatmul.mubr.f32.gmra.mxu0 1.0
      %v2132 = vpop.f32.mrf.mxu0
      %v2133 = vadd.f32 0.0, %v2132
      %v2134 = vpop.f32.mrf.mxu0
      %v2135 = vadd.f32 0.0, %v2134
      %2136 = vdwg.mxu0
      %2137 = vmatprep.subr.mxu0 %v2065
      %2138 = vmatpush1.msra.mxu0 %v2064
      %2139 = vmatprep.subr.mxu0 %v2061
      %2140 = vmatpush1.msra.mxu0 %v2060
      %2141 = vmatprep.subr.mxu0 %v2057
      %2142 = vmatpush1.msra.mxu0 %v2056
      %2143 = vmatprep.subr.mxu0 %v2053
      %2144 = vmatpush1.msra.mxu0 %v2052
      %2145 = vmatprep.subr.mxu0 %v2049
      %2146 = vmatpush1.msra.mxu0 %v2048
      %2147 = vmatprep.subr.mxu0 %v2045
      %2148 = vmatpush1.msra.mxu0 %v2044
      %2149 = vmatprep.subr.mxu0 %v2041
      %2150 = vmatpush1.msra.mxu0 %v2040
      %2151 = vmatprep.subr.mxu0 %v2037
      %2152 = vmatpush1.msra.mxu0 %v2036
      %2153 = vmatprep.subr.mxu0 %v2033
      %2154 = vmatpush1.msra.mxu0 %v2032
      %2155 = vmatprep.subr.mxu0 %v2029
      %2156 = vmatpush1.msra.mxu0 %v2028
      %2157 = vmatprep.subr.mxu0 %v2025
      %2158 = vmatpush1.msra.mxu0 %v2024
      %2159 = vmatprep.subr.mxu0 %v2021
      %2160 = vmatpush1.msra.mxu0 %v2020
      %2161 = vmatprep.subr.mxu0 %v2017
      %2162 = vmatpush1.msra.mxu0 %v2016
      %2163 = vmatprep.subr.mxu0 %v2013
      %2164 = vmatpush1.msra.mxu0 %v2012
      %2165 = vmatprep.subr.mxu0 %v2009
      %2166 = vmatpush1.msra.mxu0 %v2008
      %2167 = vmatprep.subr.mxu0 %v2005
      %2168 = vmatpush1.msra.mxu0 %v2004
      %2169 = vmatprep.subr.mxu0 0.0
      %2170 = vmatpush2.msra.mxu0 0.0
      %2171 = vmatprep.subr.mxu0 0.0
      %2172 = vmatpush2.msra.mxu0 0.0
      %2173 = vmatprep.subr.mxu0 0.0
      %2174 = vmatpush2.msra.mxu0 0.0
      %2175 = vmatprep.subr.mxu0 0.0
      %2176 = vmatpush2.msra.mxu0 0.0
      %2177 = vmatprep.subr.mxu0 0.0
      %2178 = vmatpush2.msra.mxu0 0.0
      %2179 = vmatprep.subr.mxu0 0.0
      %2180 = vmatpush2.msra.mxu0 0.0
      %2181 = vmatprep.subr.mxu0 0.0
      %2182 = vmatpush2.msra.mxu0 0.0
      %2183 = vmatprep.subr.mxu0 0.0
      %2184 = vmatpush2.msra.mxu0 0.0
      %2185 = vmatprep.subr.mxu0 0.0
      %2186 = vmatpush2.msra.mxu0 0.0
      %2187 = vmatprep.subr.mxu0 0.0
      %2188 = vmatpush2.msra.mxu0 0.0
      %2189 = vmatprep.subr.mxu0 0.0
      %2190 = vmatpush2.msra.mxu0 0.0
      %2191 = vmatprep.subr.mxu0 0.0
      %2192 = vmatpush2.msra.mxu0 0.0
      %2193 = vmatprep.subr.mxu0 0.0
      %2194 = vmatpush2.msra.mxu0 0.0
      %2195 = vmatprep.subr.mxu0 0.0
      %2196 = vmatpush2.msra.mxu0 0.0
      %2197 = vmatprep.subr.mxu0 0.0
      %2198 = vmatpush2.msra.mxu0 0.0
      %2199 = vmatprep.subr.mxu0 0.0
      %2200 = vmatpush2.msra.mxu0 0.0
      %2201 = vmatprep.mubr.f32.mxu0 0.0
      %2202 = vmatmul.mubr.f32.gmra.mxu0 1.0
      %v2203 = vpop.f32.mrf.mxu0
      %v2204 = vadd.f32 0.0, %v2203
      %v2205 = vpop.f32.mrf.mxu0
      %v2206 = vadd.f32 0.0, %v2205
      %2207 = vdwg.mxu0
      %v2208 = vmul.f32 %v2133, 0.0078125
      %v2209 = vmul.f32 %v2135, 0.0078125
      %v2210 = vmul.f32 %v2204, 0.0078125
      %v2211 = vmul.f32 %v2206, 0.0078125
      %v2212 = vadd.f32 %v2208, 1e-05
      %v2213 = vadd.f32 %v2209, 1e-05
      %v2214 = vadd.f32 %v2210, 1e-05
      %v2215 = vadd.f32 %v2211, 1e-05
      %v2216 = vrsqrt.pop %v2212
      %v2217 = vrsqrt.pop %v2213
      %v2218 = vrsqrt.pop %v2214
      %v2219 = vrsqrt.pop %v2215
      %v2220 = vlaneseq
      %v2221 = vshrl.u32 %v2220, 7
      %v2222 = vsub.s32 0, %v2221
      %v2223 = vrot.slane %v2216, %v2222
      %v2224 = vlaneseq
      %v2225 = vshrl.u32 %v2224, 7
      %v2226 = vsub.s32 0, %v2225
      %v2227 = vrot.slane %v2217, %v2226
      %v2228 = vlaneseq
      %v2229 = vshrl.u32 %v2228, 7
      %v2230 = vsub.s32 0, %v2229
      %v2231 = vrot.slane %v2218, %v2230
      %v2232 = vlaneseq
      %v2233 = vshrl.u32 %v2232, 7
      %v2234 = vsub.s32 0, %v2233
      %v2235 = vrot.slane %v2219, %v2234
      %v2236 = vmul.f32 %v1938, %v2223
      %v2237 = vmul.f32 %v1939, %v2227
      %v2238 = vmul.f32 %v1940, %v2231
      %v2239 = vmul.f32 %v1941, %v2235
      %v2240 = vmul.f32 %v1942, %v2223
      %v2241 = vmul.f32 %v1943, %v2227
      %v2242 = vmul.f32 %v1944, %v2231
      %v2243 = vmul.f32 %v1945, %v2235
      %v2244 = vmul.f32 %v1946, %v2223
      %v2245 = vmul.f32 %v1947, %v2227
      %v2246 = vmul.f32 %v1948, %v2231
      %v2247 = vmul.f32 %v1949, %v2235
      %v2248 = vmul.f32 %v1950, %v2223
      %v2249 = vmul.f32 %v1951, %v2227
      %v2250 = vmul.f32 %v1952, %v2231
      %v2251 = vmul.f32 %v1953, %v2235
      %v2252 = vmul.f32 %v1954, %v2223
      %v2253 = vmul.f32 %v1955, %v2227
      %v2254 = vmul.f32 %v1956, %v2231
      %v2255 = vmul.f32 %v1957, %v2235
      %v2256 = vmul.f32 %v1958, %v2223
      %v2257 = vmul.f32 %v1959, %v2227
      %v2258 = vmul.f32 %v1960, %v2231
      %v2259 = vmul.f32 %v1961, %v2235
      %v2260 = vmul.f32 %v1962, %v2223
      %v2261 = vmul.f32 %v1963, %v2227
      %v2262 = vmul.f32 %v1964, %v2231
      %v2263 = vmul.f32 %v1965, %v2235
      %v2264 = vmul.f32 %v1966, %v2223
      %v2265 = vmul.f32 %v1967, %v2227
      %v2266 = vmul.f32 %v1968, %v2231
      %v2267 = vmul.f32 %v1969, %v2235
      %v2268 = vmul.f32 %v1970, %v2223
      %v2269 = vmul.f32 %v1971, %v2227
      %v2270 = vmul.f32 %v1972, %v2231
      %v2271 = vmul.f32 %v1973, %v2235
      %v2272 = vmul.f32 %v1974, %v2223
      %v2273 = vmul.f32 %v1975, %v2227
      %v2274 = vmul.f32 %v1976, %v2231
      %v2275 = vmul.f32 %v1977, %v2235
      %v2276 = vmul.f32 %v1978, %v2223
      %v2277 = vmul.f32 %v1979, %v2227
      %v2278 = vmul.f32 %v1980, %v2231
      %v2279 = vmul.f32 %v1981, %v2235
      %v2280 = vmul.f32 %v1982, %v2223
      %v2281 = vmul.f32 %v1983, %v2227
      %v2282 = vmul.f32 %v1984, %v2231
      %v2283 = vmul.f32 %v1985, %v2235
      %v2284 = vmul.f32 %v1986, %v2223
      %v2285 = vmul.f32 %v1987, %v2227
      %v2286 = vmul.f32 %v1988, %v2231
      %v2287 = vmul.f32 %v1989, %v2235
      %v2288 = vmul.f32 %v1990, %v2223
      %v2289 = vmul.f32 %v1991, %v2227
      %v2290 = vmul.f32 %v1992, %v2231
      %v2291 = vmul.f32 %v1993, %v2235
      %v2292 = vmul.f32 %v1994, %v2223
      %v2293 = vmul.f32 %v1995, %v2227
      %v2294 = vmul.f32 %v1996, %v2231
      %v2295 = vmul.f32 %v1997, %v2235
      %v2296 = vmul.f32 %v1998, %v2223
      %v2297 = vmul.f32 %v1999, %v2227
      %v2298 = vmul.f32 %v2000, %v2231
      %v2299 = vmul.f32 %v2001, %v2235
      %v2300 = vld [vmem:[%s3] ss:$2 sm:$0xf]
      %v2302 = vlaneseq
      %v2303 = vshrl.u32 %v2302, 7
      %v2304 = vsub.s32 0, %v2303
      %v2305 = vrot.slane %v2300, %v2304
      %v2306 = vlaneseq
      %v2307 = vshrl.u32 %v2306, 7
      %v2308 = vsub.s32 1, %v2307
      %v2309 = vrot.slane %v2300, %v2308
      %v2310 = vlaneseq
      %v2311 = vshrl.u32 %v2310, 7
      %v2312 = vsub.s32 2, %v2311
      %v2313 = vrot.slane %v2300, %v2312
      %v2314 = vlaneseq
      %v2315 = vshrl.u32 %v2314, 7
      %v2316 = vsub.s32 3, %v2315
      %v2317 = vrot.slane %v2300, %v2316
      %v2322 = vmul.f32 %v2236, %v2305
      %v2323 = vmul.f32 %v2237, %v2309
      %v2324 = vmul.f32 %v2238, %v2313
      %v2325 = vmul.f32 %v2239, %v2317
      %v2326 = vmul.f32 %v2240, %v2305
      %v2327 = vmul.f32 %v2241, %v2309
      %v2328 = vmul.f32 %v2242, %v2313
      %v2329 = vmul.f32 %v2243, %v2317
      %v2330 = vmul.f32 %v2244, %v2305
      %v2331 = vmul.f32 %v2245, %v2309
      %v2332 = vmul.f32 %v2246, %v2313
      %v2333 = vmul.f32 %v2247, %v2317
      %v2334 = vmul.f32 %v2248, %v2305
      %v2335 = vmul.f32 %v2249, %v2309
      %v2336 = vmul.f32 %v2250, %v2313
      %v2337 = vmul.f32 %v2251, %v2317
      %v2338 = vmul.f32 %v2252, %v2305
      %v2339 = vmul.f32 %v2253, %v2309
      %v2340 = vmul.f32 %v2254, %v2313
      %v2341 = vmul.f32 %v2255, %v2317
      %v2342 = vmul.f32 %v2256, %v2305
      %v2343 = vmul.f32 %v2257, %v2309
      %v2344 = vmul.f32 %v2258, %v2313
      %v2345 = vmul.f32 %v2259, %v2317
      %v2346 = vmul.f32 %v2260, %v2305
      %v2347 = vmul.f32 %v2261, %v2309
      %v2348 = vmul.f32 %v2262, %v2313
      %v2349 = vmul.f32 %v2263, %v2317
      %v2350 = vmul.f32 %v2264, %v2305
      %v2351 = vmul.f32 %v2265, %v2309
      %v2352 = vmul.f32 %v2266, %v2313
      %v2353 = vmul.f32 %v2267, %v2317
      %v2354 = vmul.f32 %v2268, %v2305
      %v2355 = vmul.f32 %v2269, %v2309
      %v2356 = vmul.f32 %v2270, %v2313
      %v2357 = vmul.f32 %v2271, %v2317
      %v2358 = vmul.f32 %v2272, %v2305
      %v2359 = vmul.f32 %v2273, %v2309
      %v2360 = vmul.f32 %v2274, %v2313
      %v2361 = vmul.f32 %v2275, %v2317
      %v2362 = vmul.f32 %v2276, %v2305
      %v2363 = vmul.f32 %v2277, %v2309
      %v2364 = vmul.f32 %v2278, %v2313
      %v2365 = vmul.f32 %v2279, %v2317
      %v2366 = vmul.f32 %v2280, %v2305
      %v2367 = vmul.f32 %v2281, %v2309
      %v2368 = vmul.f32 %v2282, %v2313
      %v2369 = vmul.f32 %v2283, %v2317
      %v2370 = vmul.f32 %v2284, %v2305
      %v2371 = vmul.f32 %v2285, %v2309
      %v2372 = vmul.f32 %v2286, %v2313
      %v2373 = vmul.f32 %v2287, %v2317
      %v2374 = vmul.f32 %v2288, %v2305
      %v2375 = vmul.f32 %v2289, %v2309
      %v2376 = vmul.f32 %v2290, %v2313
      %v2377 = vmul.f32 %v2291, %v2317
      %v2378 = vmul.f32 %v2292, %v2305
      %v2379 = vmul.f32 %v2293, %v2309
      %v2380 = vmul.f32 %v2294, %v2313
      %v2381 = vmul.f32 %v2295, %v2317
      %v2382 = vmul.f32 %v2296, %v2305
      %v2383 = vmul.f32 %v2297, %v2309
      %v2384 = vmul.f32 %v2298, %v2313
      %v2385 = vmul.f32 %v2299, %v2317
      %s2386 = scalar_lea.vmem %s3, 1
      %v2387 = vld [vmem:[%s2386] ss:$2 sm:$0xf]
      %v2389 = vlaneseq
      %v2390 = vshrl.u32 %v2389, 7
      %v2391 = vsub.s32 0, %v2390
      %v2392 = vrot.slane %v2387, %v2391
      %v2393 = vlaneseq
      %v2394 = vshrl.u32 %v2393, 7
      %v2395 = vsub.s32 1, %v2394
      %v2396 = vrot.slane %v2387, %v2395
      %v2397 = vlaneseq
      %v2398 = vshrl.u32 %v2397, 7
      %v2399 = vsub.s32 2, %v2398
      %v2400 = vrot.slane %v2387, %v2399
      %v2401 = vlaneseq
      %v2402 = vshrl.u32 %v2401, 7
      %v2403 = vsub.s32 3, %v2402
      %v2404 = vrot.slane %v2387, %v2403
      %v2409 = vadd.f32 %v2322, %v2392
      %v2410 = vadd.f32 %v2323, %v2396
      %v2411 = vadd.f32 %v2324, %v2400
      %v2412 = vadd.f32 %v2325, %v2404
      %v2413 = vadd.f32 %v2326, %v2392
      %v2414 = vadd.f32 %v2327, %v2396
      %v2415 = vadd.f32 %v2328, %v2400
      %v2416 = vadd.f32 %v2329, %v2404
      %v2417 = vadd.f32 %v2330, %v2392
      %v2418 = vadd.f32 %v2331, %v2396
      %v2419 = vadd.f32 %v2332, %v2400
      %v2420 = vadd.f32 %v2333, %v2404
      %v2421 = vadd.f32 %v2334, %v2392
      %v2422 = vadd.f32 %v2335, %v2396
      %v2423 = vadd.f32 %v2336, %v2400
      %v2424 = vadd.f32 %v2337, %v2404
      %v2425 = vadd.f32 %v2338, %v2392
      %v2426 = vadd.f32 %v2339, %v2396
      %v2427 = vadd.f32 %v2340, %v2400
      %v2428 = vadd.f32 %v2341, %v2404
      %v2429 = vadd.f32 %v2342, %v2392
      %v2430 = vadd.f32 %v2343, %v2396
      %v2431 = vadd.f32 %v2344, %v2400
      %v2432 = vadd.f32 %v2345, %v2404
      %v2433 = vadd.f32 %v2346, %v2392
      %v2434 = vadd.f32 %v2347, %v2396
      %v2435 = vadd.f32 %v2348, %v2400
      %v2436 = vadd.f32 %v2349, %v2404
      %v2437 = vadd.f32 %v2350, %v2392
      %v2438 = vadd.f32 %v2351, %v2396
      %v2439 = vadd.f32 %v2352, %v2400
      %v2440 = vadd.f32 %v2353, %v2404
      %v2441 = vadd.f32 %v2354, %v2392
      %v2442 = vadd.f32 %v2355, %v2396
      %v2443 = vadd.f32 %v2356, %v2400
      %v2444 = vadd.f32 %v2357, %v2404
      %v2445 = vadd.f32 %v2358, %v2392
      %v2446 = vadd.f32 %v2359, %v2396
      %v2447 = vadd.f32 %v2360, %v2400
      %v2448 = vadd.f32 %v2361, %v2404
      %v2449 = vadd.f32 %v2362, %v2392
      %v2450 = vadd.f32 %v2363, %v2396
      %v2451 = vadd.f32 %v2364, %v2400
      %v2452 = vadd.f32 %v2365, %v2404
      %v2453 = vadd.f32 %v2366, %v2392
      %v2454 = vadd.f32 %v2367, %v2396
      %v2455 = vadd.f32 %v2368, %v2400
      %v2456 = vadd.f32 %v2369, %v2404
      %v2457 = vadd.f32 %v2370, %v2392
      %v2458 = vadd.f32 %v2371, %v2396
      %v2459 = vadd.f32 %v2372, %v2400
      %v2460 = vadd.f32 %v2373, %v2404
      %v2461 = vadd.f32 %v2374, %v2392
      %v2462 = vadd.f32 %v2375, %v2396
      %v2463 = vadd.f32 %v2376, %v2400
      %v2464 = vadd.f32 %v2377, %v2404
      %v2465 = vadd.f32 %v2378, %v2392
      %v2466 = vadd.f32 %v2379, %v2396
      %v2467 = vadd.f32 %v2380, %v2400
      %v2468 = vadd.f32 %v2381, %v2404
      %v2469 = vadd.f32 %v2382, %v2392
      %v2470 = vadd.f32 %v2383, %v2396
      %v2471 = vadd.f32 %v2384, %v2400
      %v2472 = vadd.f32 %v2385, %v2404
      %v2473 = vmax.f32 %v2409, 0.0
      %v2474 = vmax.f32 %v2410, 0.0
      %v2475 = vmax.f32 %v2411, 0.0
      %v2476 = vmax.f32 %v2412, 0.0
      %v2477 = vmax.f32 %v2413, 0.0
      %v2478 = vmax.f32 %v2414, 0.0
      %v2479 = vmax.f32 %v2415, 0.0
      %v2480 = vmax.f32 %v2416, 0.0
      %v2481 = vmax.f32 %v2417, 0.0
      %v2482 = vmax.f32 %v2418, 0.0
      %v2483 = vmax.f32 %v2419, 0.0
      %v2484 = vmax.f32 %v2420, 0.0
      %v2485 = vmax.f32 %v2421, 0.0
      %v2486 = vmax.f32 %v2422, 0.0
      %v2487 = vmax.f32 %v2423, 0.0
      %v2488 = vmax.f32 %v2424, 0.0
      %v2489 = vmax.f32 %v2425, 0.0
      %v2490 = vmax.f32 %v2426, 0.0
      %v2491 = vmax.f32 %v2427, 0.0
      %v2492 = vmax.f32 %v2428, 0.0
      %v2493 = vmax.f32 %v2429, 0.0
      %v2494 = vmax.f32 %v2430, 0.0
      %v2495 = vmax.f32 %v2431, 0.0
      %v2496 = vmax.f32 %v2432, 0.0
      %v2497 = vmax.f32 %v2433, 0.0
      %v2498 = vmax.f32 %v2434, 0.0
      %v2499 = vmax.f32 %v2435, 0.0
      %v2500 = vmax.f32 %v2436, 0.0
      %v2501 = vmax.f32 %v2437, 0.0
      %v2502 = vmax.f32 %v2438, 0.0
      %v2503 = vmax.f32 %v2439, 0.0
      %v2504 = vmax.f32 %v2440, 0.0
      %v2505 = vmax.f32 %v2441, 0.0
      %v2506 = vmax.f32 %v2442, 0.0
      %v2507 = vmax.f32 %v2443, 0.0
      %v2508 = vmax.f32 %v2444, 0.0
      %v2509 = vmax.f32 %v2445, 0.0
      %v2510 = vmax.f32 %v2446, 0.0
      %v2511 = vmax.f32 %v2447, 0.0
      %v2512 = vmax.f32 %v2448, 0.0
      %v2513 = vmax.f32 %v2449, 0.0
      %v2514 = vmax.f32 %v2450, 0.0
      %v2515 = vmax.f32 %v2451, 0.0
      %v2516 = vmax.f32 %v2452, 0.0
      %v2517 = vmax.f32 %v2453, 0.0
      %v2518 = vmax.f32 %v2454, 0.0
      %v2519 = vmax.f32 %v2455, 0.0
      %v2520 = vmax.f32 %v2456, 0.0
      %v2521 = vmax.f32 %v2457, 0.0
      %v2522 = vmax.f32 %v2458, 0.0
      %v2523 = vmax.f32 %v2459, 0.0
      %v2524 = vmax.f32 %v2460, 0.0
      %v2525 = vmax.f32 %v2461, 0.0
      %v2526 = vmax.f32 %v2462, 0.0
      %v2527 = vmax.f32 %v2463, 0.0
      %v2528 = vmax.f32 %v2464, 0.0
      %v2529 = vmax.f32 %v2465, 0.0
      %v2530 = vmax.f32 %v2466, 0.0
      %v2531 = vmax.f32 %v2467, 0.0
      %v2532 = vmax.f32 %v2468, 0.0
      %v2533 = vmax.f32 %v2469, 0.0
      %v2534 = vmax.f32 %v2470, 0.0
      %v2535 = vmax.f32 %v2471, 0.0
      %v2536 = vmax.f32 %v2472, 0.0
      %v2537 = vpack.c.bf16 %v2477, %v2473
      %v2538 = vpack.c.bf16 %v2478, %v2474
      %v2539 = vpack.c.bf16 %v2479, %v2475
      %v2540 = vpack.c.bf16 %v2480, %v2476
      %v2541 = vpack.c.bf16 %v2485, %v2481
      %v2542 = vpack.c.bf16 %v2486, %v2482
      %v2543 = vpack.c.bf16 %v2487, %v2483
      %v2544 = vpack.c.bf16 %v2488, %v2484
      %v2545 = vpack.c.bf16 %v2493, %v2489
      %v2546 = vpack.c.bf16 %v2494, %v2490
      %v2547 = vpack.c.bf16 %v2495, %v2491
      %v2548 = vpack.c.bf16 %v2496, %v2492
      %v2549 = vpack.c.bf16 %v2501, %v2497
      %v2550 = vpack.c.bf16 %v2502, %v2498
      %v2551 = vpack.c.bf16 %v2503, %v2499
      %v2552 = vpack.c.bf16 %v2504, %v2500
      %v2553 = vpack.c.bf16 %v2509, %v2505
      %v2554 = vpack.c.bf16 %v2510, %v2506
      %v2555 = vpack.c.bf16 %v2511, %v2507
      %v2556 = vpack.c.bf16 %v2512, %v2508
      %v2557 = vpack.c.bf16 %v2517, %v2513
      %v2558 = vpack.c.bf16 %v2518, %v2514
      %v2559 = vpack.c.bf16 %v2519, %v2515
      %v2560 = vpack.c.bf16 %v2520, %v2516
      %v2561 = vpack.c.bf16 %v2525, %v2521
      %v2562 = vpack.c.bf16 %v2526, %v2522
      %v2563 = vpack.c.bf16 %v2527, %v2523
      %v2564 = vpack.c.bf16 %v2528, %v2524
      %v2565 = vpack.c.bf16 %v2533, %v2529
      %v2566 = vpack.c.bf16 %v2534, %v2530
      %v2567 = vpack.c.bf16 %v2535, %v2531
      %v2568 = vpack.c.bf16 %v2536, %v2532
      %v2569 = vld [vmem:[%s5] sm:$0xf]
      %v2570 = vld [vmem:[%s5 + $0x4] sm:$0xf]
      %v2571 = vld [vmem:[%s5 + $0x8] sm:$0xf]
      %v2572 = vld [vmem:[%s5 + $0xc] sm:$0xf]
      %v2573 = vld [vmem:[%s5 + $0x10] sm:$0xf]
      %v2574 = vld [vmem:[%s5 + $0x14] sm:$0xf]
      %v2575 = vld [vmem:[%s5 + $0x18] sm:$0xf]
      %v2576 = vld [vmem:[%s5 + $0x1c] sm:$0xf]
      %v2577 = vld [vmem:[%s5 + $0x20] sm:$0xf]
      %v2578 = vld [vmem:[%s5 + $0x24] sm:$0xf]
      %v2579 = vld [vmem:[%s5 + $0x28] sm:$0xf]
      %v2580 = vld [vmem:[%s5 + $0x2c] sm:$0xf]
      %v2581 = vld [vmem:[%s5 + $0x30] sm:$0xf]
      %v2582 = vld [vmem:[%s5 + $0x34] sm:$0xf]
      %v2583 = vld [vmem:[%s5 + $0x38] sm:$0xf]
      %v2584 = vld [vmem:[%s5 + $0x3c] sm:$0xf]
      %v2585 = vld [vmem:[%s5 + $0x40] sm:$0xf]
      %v2586 = vld [vmem:[%s5 + $0x44] sm:$0xf]
      %v2587 = vld [vmem:[%s5 + $0x48] sm:$0xf]
      %v2588 = vld [vmem:[%s5 + $0x4c] sm:$0xf]
      %v2589 = vld [vmem:[%s5 + $0x50] sm:$0xf]
      %v2590 = vld [vmem:[%s5 + $0x54] sm:$0xf]
      %v2591 = vld [vmem:[%s5 + $0x58] sm:$0xf]
      %v2592 = vld [vmem:[%s5 + $0x5c] sm:$0xf]
      %v2593 = vld [vmem:[%s5 + $0x60] sm:$0xf]
      %v2594 = vld [vmem:[%s5 + $0x64] sm:$0xf]
      %v2595 = vld [vmem:[%s5 + $0x68] sm:$0xf]
      %v2596 = vld [vmem:[%s5 + $0x6c] sm:$0xf]
      %v2597 = vld [vmem:[%s5 + $0x70] sm:$0xf]
      %v2598 = vld [vmem:[%s5 + $0x74] sm:$0xf]
      %v2599 = vld [vmem:[%s5 + $0x78] sm:$0xf]
      %v2600 = vld [vmem:[%s5 + $0x7c] sm:$0xf]
      %v2601 = vld [vmem:[%s5 + $0x80] sm:$0xf]
      %v2602 = vld [vmem:[%s5 + $0x84] sm:$0xf]
      %v2603 = vld [vmem:[%s5 + $0x88] sm:$0xf]
      %v2604 = vld [vmem:[%s5 + $0x8c] sm:$0xf]
      %v2605 = vld [vmem:[%s5 + $0x90] sm:$0xf]
      %v2606 = vld [vmem:[%s5 + $0x94] sm:$0xf]
      %v2607 = vld [vmem:[%s5 + $0x98] sm:$0xf]
      %v2608 = vld [vmem:[%s5 + $0x9c] sm:$0xf]
      %v2609 = vld [vmem:[%s5 + $0xa0] sm:$0xf]
      %v2610 = vld [vmem:[%s5 + $0xa4] sm:$0xf]
      %v2611 = vld [vmem:[%s5 + $0xa8] sm:$0xf]
      %v2612 = vld [vmem:[%s5 + $0xac] sm:$0xf]
      %v2613 = vld [vmem:[%s5 + $0xb0] sm:$0xf]
      %v2614 = vld [vmem:[%s5 + $0xb4] sm:$0xf]
      %v2615 = vld [vmem:[%s5 + $0xb8] sm:$0xf]
      %v2616 = vld [vmem:[%s5 + $0xbc] sm:$0xf]
      %v2617 = vld [vmem:[%s5 + $0xc0] sm:$0xf]
      %v2618 = vld [vmem:[%s5 + $0xc4] sm:$0xf]
      %v2619 = vld [vmem:[%s5 + $0xc8] sm:$0xf]
      %v2620 = vld [vmem:[%s5 + $0xcc] sm:$0xf]
      %v2621 = vld [vmem:[%s5 + $0xd0] sm:$0xf]
      %v2622 = vld [vmem:[%s5 + $0xd4] sm:$0xf]
      %v2623 = vld [vmem:[%s5 + $0xd8] sm:$0xf]
      %v2624 = vld [vmem:[%s5 + $0xdc] sm:$0xf]
      %v2625 = vld [vmem:[%s5 + $0xe0] sm:$0xf]
      %v2626 = vld [vmem:[%s5 + $0xe4] sm:$0xf]
      %v2627 = vld [vmem:[%s5 + $0xe8] sm:$0xf]
      %v2628 = vld [vmem:[%s5 + $0xec] sm:$0xf]
      %v2629 = vld [vmem:[%s5 + $0xf0] sm:$0xf]
      %v2630 = vld [vmem:[%s5 + $0xf4] sm:$0xf]
      %v2631 = vld [vmem:[%s5 + $0xf8] sm:$0xf]
      %v2632 = vld [vmem:[%s5 + $0xfc] sm:$0xf]
      %v2633 = vld [vmem:[%s4 + $0x1] sm:$0x1]
      %v2634 = vlaneseq
      %v2635 = vshrl.u32 %v2634, 7
      %v2636 = vsub.s32 0, %v2635
      %v2637 = vrot.slane %v2633, %v2636
      %v2702 = vunpack.c.l.b16 %v2569
      %v2703 = vunpack.c.l.b16 %v2570
      %v2704 = vunpack.c.l.b16 %v2571
      %v2705 = vunpack.c.l.b16 %v2572
      %v2706 = vunpack.c.l.b16 %v2573
      %v2707 = vunpack.c.l.b16 %v2574
      %v2708 = vunpack.c.l.b16 %v2575
      %v2709 = vunpack.c.l.b16 %v2576
      %v2710 = vunpack.c.l.b16 %v2577
      %v2711 = vunpack.c.l.b16 %v2578
      %v2712 = vunpack.c.l.b16 %v2579
      %v2713 = vunpack.c.l.b16 %v2580
      %v2714 = vunpack.c.l.b16 %v2581
      %v2715 = vunpack.c.l.b16 %v2582
      %v2716 = vunpack.c.l.b16 %v2583
      %v2717 = vunpack.c.l.b16 %v2584
      %v2718 = vunpack.c.l.b16 %v2585
      %v2719 = vunpack.c.l.b16 %v2586
      %v2720 = vunpack.c.l.b16 %v2587
      %v2721 = vunpack.c.l.b16 %v2588
      %v2722 = vunpack.c.l.b16 %v2589
      %v2723 = vunpack.c.l.b16 %v2590
      %v2724 = vunpack.c.l.b16 %v2591
      %v2725 = vunpack.c.l.b16 %v2592
      %v2726 = vunpack.c.l.b16 %v2593
      %v2727 = vunpack.c.l.b16 %v2594
      %v2728 = vunpack.c.l.b16 %v2595
      %v2729 = vunpack.c.l.b16 %v2596
      %v2730 = vunpack.c.l.b16 %v2597
      %v2731 = vunpack.c.l.b16 %v2598
      %v2732 = vunpack.c.l.b16 %v2599
      %v2733 = vunpack.c.l.b16 %v2600
      %v2734 = vunpack.c.l.b16 %v2601
      %v2735 = vunpack.c.l.b16 %v2602
      %v2736 = vunpack.c.l.b16 %v2603
      %v2737 = vunpack.c.l.b16 %v2604
      %v2738 = vunpack.c.l.b16 %v2605
      %v2739 = vunpack.c.l.b16 %v2606
      %v2740 = vunpack.c.l.b16 %v2607
      %v2741 = vunpack.c.l.b16 %v2608
      %v2742 = vunpack.c.l.b16 %v2609
      %v2743 = vunpack.c.l.b16 %v2610
      %v2744 = vunpack.c.l.b16 %v2611
      %v2745 = vunpack.c.l.b16 %v2612
      %v2746 = vunpack.c.l.b16 %v2613
      %v2747 = vunpack.c.l.b16 %v2614
      %v2748 = vunpack.c.l.b16 %v2615
      %v2749 = vunpack.c.l.b16 %v2616
      %v2750 = vunpack.c.l.b16 %v2617
      %v2751 = vunpack.c.l.b16 %v2618
      %v2752 = vunpack.c.l.b16 %v2619
      %v2753 = vunpack.c.l.b16 %v2620
      %v2754 = vunpack.c.l.b16 %v2621
      %v2755 = vunpack.c.l.b16 %v2622
      %v2756 = vunpack.c.l.b16 %v2623
      %v2757 = vunpack.c.l.b16 %v2624
      %v2758 = vunpack.c.l.b16 %v2625
      %v2759 = vunpack.c.l.b16 %v2626
      %v2760 = vunpack.c.l.b16 %v2627
      %v2761 = vunpack.c.l.b16 %v2628
      %v2762 = vunpack.c.l.b16 %v2629
      %v2763 = vunpack.c.l.b16 %v2630
      %v2764 = vunpack.c.l.b16 %v2631
      %v2765 = vunpack.c.l.b16 %v2632
      %v2766 = vpack.c.b16 %v2703, %v2702
      %v2767 = vpack.c.b16 %v2705, %v2704
      %v2768 = vpack.c.b16 %v2707, %v2706
      %v2769 = vpack.c.b16 %v2709, %v2708
      %v2770 = vpack.c.b16 %v2711, %v2710
      %v2771 = vpack.c.b16 %v2713, %v2712
      %v2772 = vpack.c.b16 %v2715, %v2714
      %v2773 = vpack.c.b16 %v2717, %v2716
      %v2774 = vpack.c.b16 %v2719, %v2718
      %v2775 = vpack.c.b16 %v2721, %v2720
      %v2776 = vpack.c.b16 %v2723, %v2722
      %v2777 = vpack.c.b16 %v2725, %v2724
      %v2778 = vpack.c.b16 %v2727, %v2726
      %v2779 = vpack.c.b16 %v2729, %v2728
      %v2780 = vpack.c.b16 %v2731, %v2730
      %v2781 = vpack.c.b16 %v2733, %v2732
      %v2782 = vpack.c.b16 %v2735, %v2734
      %v2783 = vpack.c.b16 %v2737, %v2736
      %v2784 = vpack.c.b16 %v2739, %v2738
      %v2785 = vpack.c.b16 %v2741, %v2740
      %v2786 = vpack.c.b16 %v2743, %v2742
      %v2787 = vpack.c.b16 %v2745, %v2744
      %v2788 = vpack.c.b16 %v2747, %v2746
      %v2789 = vpack.c.b16 %v2749, %v2748
      %v2790 = vpack.c.b16 %v2751, %v2750
      %v2791 = vpack.c.b16 %v2753, %v2752
      %v2792 = vpack.c.b16 %v2755, %v2754
      %v2793 = vpack.c.b16 %v2757, %v2756
      %v2794 = vpack.c.b16 %v2759, %v2758
      %v2795 = vpack.c.b16 %v2761, %v2760
      %v2796 = vpack.c.b16 %v2763, %v2762
      %v2797 = vpack.c.b16 %v2765, %v2764
      %2830 = vmatprep.subr.bf16.mxu0 0
      %2831 = vmatpush1.bf16.msra.mxu0 %v2773
      %2832 = vmatprep.subr.bf16.mxu0 0
      %2833 = vmatpush1.bf16.msra.mxu0 %v2772
      %2834 = vmatprep.subr.bf16.mxu0 0
      %2835 = vmatpush1.bf16.msra.mxu0 %v2771
      %2836 = vmatprep.subr.bf16.mxu0 0
      %2837 = vmatpush1.bf16.msra.mxu0 %v2770
      %2838 = vmatprep.subr.bf16.mxu0 0
      %2839 = vmatpush1.bf16.msra.mxu0 %v2769
      %2840 = vmatprep.subr.bf16.mxu0 0
      %2841 = vmatpush1.bf16.msra.mxu0 %v2768
      %2842 = vmatprep.subr.bf16.mxu0 0
      %2843 = vmatpush1.bf16.msra.mxu0 %v2767
      %2844 = vmatprep.subr.bf16.mxu0 0
      %2845 = vmatpush1.bf16.msra.mxu0 %v2766
      %2846 = vmatprep.subr.bf16.mxu0 0
      %2847 = vmatpush2.bf16.msra.mxu0 %v2781
      %2848 = vmatprep.subr.bf16.mxu0 0
      %2849 = vmatpush2.bf16.msra.mxu0 %v2780
      %2850 = vmatprep.subr.bf16.mxu0 0
      %2851 = vmatpush2.bf16.msra.mxu0 %v2779
      %2852 = vmatprep.subr.bf16.mxu0 0
      %2853 = vmatpush2.bf16.msra.mxu0 %v2778
      %2854 = vmatprep.subr.bf16.mxu0 0
      %2855 = vmatpush2.bf16.msra.mxu0 %v2777
      %2856 = vmatprep.subr.bf16.mxu0 0
      %2857 = vmatpush2.bf16.msra.mxu0 %v2776
      %2858 = vmatprep.subr.bf16.mxu0 0
      %2859 = vmatpush2.bf16.msra.mxu0 %v2775
      %2860 = vmatprep.subr.bf16.mxu0 0
      %2861 = vmatpush2.bf16.msra.mxu0 %v2774
      %2862 = vmatprep.mubr.bf16.mxu0 %v2538
      %2863 = vmatmul.mubr.bf16.gmra.mxu0 %v2537
      %v2864 = vpop.f32.mrf.mxu0
      %v2865 = vadd.f32 %v2637, %v2864
      %v2866 = vpop.f32.mrf.mxu0
      %v2867 = vpop.f32.mrf.mxu0
      %v2868 = vadd.f32 %v2637, %v2867
      %v2869 = vpop.f32.mrf.mxu0
      %2870 = vmatprep.mubr.bf16.mxu0 %v2542
      %2871 = vmatmul.mubr.bf16.gmra.mxu0 %v2541
      %v2872 = vpop.f32.mrf.mxu0
      %v2873 = vadd.f32 %v2637, %v2872
      %v2874 = vpop.f32.mrf.mxu0
      %v2875 = vpop.f32.mrf.mxu0
      %v2876 = vadd.f32 %v2637, %v2875
      %v2877 = vpop.f32.mrf.mxu0
      %2878 = vmatprep.mubr.bf16.mxu0 %v2546
      %2879 = vmatmul.mubr.bf16.gmra.mxu0 %v2545
      %v2880 = vpop.f32.mrf.mxu0
      %v2881 = vadd.f32 %v2637, %v2880
      %v2882 = vpop.f32.mrf.mxu0
      %v2883 = vpop.f32.mrf.mxu0
      %v2884 = vadd.f32 %v2637, %v2883
      %v2885 = vpop.f32.mrf.mxu0
      %2886 = vmatprep.mubr.bf16.mxu0 %v2550
      %2887 = vmatmul.mubr.bf16.gmra.mxu0 %v2549
      %v2888 = vpop.f32.mrf.mxu0
      %v2889 = vadd.f32 %v2637, %v2888
      %v2890 = vpop.f32.mrf.mxu0
      %v2891 = vpop.f32.mrf.mxu0
      %v2892 = vadd.f32 %v2637, %v2891
      %v2893 = vpop.f32.mrf.mxu0
      %2894 = vmatprep.mubr.bf16.mxu0 %v2554
      %2895 = vmatmul.mubr.bf16.gmra.mxu0 %v2553
      %v2896 = vpop.f32.mrf.mxu0
      %v2897 = vadd.f32 %v2637, %v2896
      %v2898 = vpop.f32.mrf.mxu0
      %v2899 = vpop.f32.mrf.mxu0
      %v2900 = vadd.f32 %v2637, %v2899
      %v2901 = vpop.f32.mrf.mxu0
      %2902 = vmatprep.mubr.bf16.mxu0 %v2558
      %2903 = vmatmul.mubr.bf16.gmra.mxu0 %v2557
      %v2904 = vpop.f32.mrf.mxu0
      %v2905 = vadd.f32 %v2637, %v2904
      %v2906 = vpop.f32.mrf.mxu0
      %v2907 = vpop.f32.mrf.mxu0
      %v2908 = vadd.f32 %v2637, %v2907
      %v2909 = vpop.f32.mrf.mxu0
      %2910 = vmatprep.mubr.bf16.mxu0 %v2562
      %2911 = vmatmul.mubr.bf16.gmra.mxu0 %v2561
      %v2912 = vpop.f32.mrf.mxu0
      %v2913 = vadd.f32 %v2637, %v2912
      %v2914 = vpop.f32.mrf.mxu0
      %v2915 = vpop.f32.mrf.mxu0
      %v2916 = vadd.f32 %v2637, %v2915
      %v2917 = vpop.f32.mrf.mxu0
      %2918 = vmatprep.mubr.bf16.mxu0 %v2566
      %2919 = vmatmul.mubr.bf16.gmra.mxu0 %v2565
      %v2920 = vpop.f32.mrf.mxu0
      %v2921 = vadd.f32 %v2637, %v2920
      %v2922 = vpop.f32.mrf.mxu0
      %v2923 = vpop.f32.mrf.mxu0
      %v2924 = vadd.f32 %v2637, %v2923
      %v2925 = vpop.f32.mrf.mxu0
      %2926 = vdwg.mxu0
      %2927 = vmatprep.subr.bf16.mxu0 0
      %2928 = vmatpush1.bf16.msra.mxu0 %v2789
      %2929 = vmatprep.subr.bf16.mxu0 0
      %2930 = vmatpush1.bf16.msra.mxu0 %v2788
      %2931 = vmatprep.subr.bf16.mxu0 0
      %2932 = vmatpush1.bf16.msra.mxu0 %v2787
      %2933 = vmatprep.subr.bf16.mxu0 0
      %2934 = vmatpush1.bf16.msra.mxu0 %v2786
      %2935 = vmatprep.subr.bf16.mxu0 0
      %2936 = vmatpush1.bf16.msra.mxu0 %v2785
      %2937 = vmatprep.subr.bf16.mxu0 0
      %2938 = vmatpush1.bf16.msra.mxu0 %v2784
      %2939 = vmatprep.subr.bf16.mxu0 0
      %2940 = vmatpush1.bf16.msra.mxu0 %v2783
      %2941 = vmatprep.subr.bf16.mxu0 0
      %2942 = vmatpush1.bf16.msra.mxu0 %v2782
      %2943 = vmatprep.subr.bf16.mxu0 0
      %2944 = vmatpush2.bf16.msra.mxu0 %v2797
      %2945 = vmatprep.subr.bf16.mxu0 0
      %2946 = vmatpush2.bf16.msra.mxu0 %v2796
      %2947 = vmatprep.subr.bf16.mxu0 0
      %2948 = vmatpush2.bf16.msra.mxu0 %v2795
      %2949 = vmatprep.subr.bf16.mxu0 0
      %2950 = vmatpush2.bf16.msra.mxu0 %v2794
      %2951 = vmatprep.subr.bf16.mxu0 0
      %2952 = vmatpush2.bf16.msra.mxu0 %v2793
      %2953 = vmatprep.subr.bf16.mxu0 0
      %2954 = vmatpush2.bf16.msra.mxu0 %v2792
      %2955 = vmatprep.subr.bf16.mxu0 0
      %2956 = vmatpush2.bf16.msra.mxu0 %v2791
      %2957 = vmatprep.subr.bf16.mxu0 0
      %2958 = vmatpush2.bf16.msra.mxu0 %v2790
      %2959 = vmatprep.mubr.bf16.mxu0 %v2540
      %2960 = vmatmul.mubr.bf16.gmra.mxu0 %v2539
      %v2961 = vpop.f32.mrf.mxu0
      %v2962 = vadd.f32 %v2865, %v2961
      %v2963 = vpop.f32.mrf.mxu0
      %v2964 = vpop.f32.mrf.mxu0
      %v2965 = vadd.f32 %v2868, %v2964
      %v2966 = vpop.f32.mrf.mxu0
      %2967 = vmatprep.mubr.bf16.mxu0 %v2544
      %2968 = vmatmul.mubr.bf16.gmra.mxu0 %v2543
      %v2969 = vpop.f32.mrf.mxu0
      %v2970 = vadd.f32 %v2873, %v2969
      %v2971 = vpop.f32.mrf.mxu0
      %v2972 = vpop.f32.mrf.mxu0
      %v2973 = vadd.f32 %v2876, %v2972
      %v2974 = vpop.f32.mrf.mxu0
      %2975 = vmatprep.mubr.bf16.mxu0 %v2548
      %2976 = vmatmul.mubr.bf16.gmra.mxu0 %v2547
      %v2977 = vpop.f32.mrf.mxu0
      %v2978 = vadd.f32 %v2881, %v2977
      %v2979 = vpop.f32.mrf.mxu0
      %v2980 = vpop.f32.mrf.mxu0
      %v2981 = vadd.f32 %v2884, %v2980
      %v2982 = vpop.f32.mrf.mxu0
      %2983 = vmatprep.mubr.bf16.mxu0 %v2552
      %2984 = vmatmul.mubr.bf16.gmra.mxu0 %v2551
      %v2985 = vpop.f32.mrf.mxu0
      %v2986 = vadd.f32 %v2889, %v2985
      %v2987 = vpop.f32.mrf.mxu0
      %v2988 = vpop.f32.mrf.mxu0
      %v2989 = vadd.f32 %v2892, %v2988
      %v2990 = vpop.f32.mrf.mxu0
      %2991 = vmatprep.mubr.bf16.mxu0 %v2556
      %2992 = vmatmul.mubr.bf16.gmra.mxu0 %v2555
      %v2993 = vpop.f32.mrf.mxu0
      %v2994 = vadd.f32 %v2897, %v2993
      %v2995 = vpop.f32.mrf.mxu0
      %v2996 = vpop.f32.mrf.mxu0
      %v2997 = vadd.f32 %v2900, %v2996
      %v2998 = vpop.f32.mrf.mxu0
      %2999 = vmatprep.mubr.bf16.mxu0 %v2560
      %3000 = vmatmul.mubr.bf16.gmra.mxu0 %v2559
      %v3001 = vpop.f32.mrf.mxu0
      %v3002 = vadd.f32 %v2905, %v3001
      %v3003 = vpop.f32.mrf.mxu0
      %v3004 = vpop.f32.mrf.mxu0
      %v3005 = vadd.f32 %v2908, %v3004
      %v3006 = vpop.f32.mrf.mxu0
      %3007 = vmatprep.mubr.bf16.mxu0 %v2564
      %3008 = vmatmul.mubr.bf16.gmra.mxu0 %v2563
      %v3009 = vpop.f32.mrf.mxu0
      %v3010 = vadd.f32 %v2913, %v3009
      %v3011 = vpop.f32.mrf.mxu0
      %v3012 = vpop.f32.mrf.mxu0
      %v3013 = vadd.f32 %v2916, %v3012
      %v3014 = vpop.f32.mrf.mxu0
      %3015 = vmatprep.mubr.bf16.mxu0 %v2568
      %3016 = vmatmul.mubr.bf16.gmra.mxu0 %v2567
      %v3017 = vpop.f32.mrf.mxu0
      %v3018 = vadd.f32 %v2921, %v3017
      %v3019 = vpop.f32.mrf.mxu0
      %v3020 = vpop.f32.mrf.mxu0
      %v3021 = vadd.f32 %v2924, %v3020
      %v3022 = vpop.f32.mrf.mxu0
      %3023 = vdwg.mxu0
      %3024 = vst [vmem:[%s251] sm:$0xff] %v2962
      %3025 = vst [vmem:[%s251 + $0x8] sm:$0xff] %v2965
      %3026 = vst [vmem:[%s251 + $0x10] sm:$0xff] %v2970
      %3027 = vst [vmem:[%s251 + $0x18] sm:$0xff] %v2973
      %3028 = vst [vmem:[%s251 + $0x20] sm:$0xff] %v2978
      %3029 = vst [vmem:[%s251 + $0x28] sm:$0xff] %v2981
      %3030 = vst [vmem:[%s251 + $0x30] sm:$0xff] %v2986
      %3031 = vst [vmem:[%s251 + $0x38] sm:$0xff] %v2989
      %3032 = vst [vmem:[%s251 + $0x40] sm:$0xff] %v2994
      %3033 = vst [vmem:[%s251 + $0x48] sm:$0xff] %v2997
      %3034 = vst [vmem:[%s251 + $0x50] sm:$0xff] %v3002
      %3035 = vst [vmem:[%s251 + $0x58] sm:$0xff] %v3005
      %3036 = vst [vmem:[%s251 + $0x60] sm:$0xff] %v3010
      %3037 = vst [vmem:[%s251 + $0x68] sm:$0xff] %v3013
      %3038 = vst [vmem:[%s251 + $0x70] sm:$0xff] %v3018
      %3039 = vst [vmem:[%s251 + $0x78] sm:$0xff] %v3021
      %p3040 = scmp.lt.s32.totalorder %s17, 1
      %s3041 = scalar_select %p3040, %s17, 1
      %s3042 = smul.addr %s3041, 16
      %s3043 = smul.addr %s3042, 8
      %s3044 = scalar_lea.vmem %s6, %s3043
      // Predicated region
      $region45: #{cifar_classifier_forward.1} parent=43 // pred_check
        %p3045 = pneg %p166
      $region46: #{cifar_classifier_forward.1} parent=43 // pred_check_branch
        %3047 = sbr.rel (%p3045) target = $region48
      $region47: #{cifar_classifier_forward.1} parent=43 // pred_region
        _
      $region48: #{cifar_classifier_forward.1} parent=43 // pred_fallthru
        _
    $region44: #{cifar_classifier_forward.1} parent=5 // pred_fallthru
      _
    %p3048 = scmp.le.s32.totalorder 2, %s12
    // Predicated region
    $region49: #{cifar_classifier_forward.1} parent=5 // pred_check
      %p3049 = pneg %p3048
    $region50: #{cifar_classifier_forward.1} parent=5 // pred_check_branch
      %3051 = sbr.rel (%p3049) target = $region52
    $region51: #{cifar_classifier_forward.1} parent=5 // pred_region
      %s3052 = ssub.s32 %s12, 2
      // Predicated region
      $region53: #{cifar_classifier_forward.1} parent=51 // pred_check
        %p3053 = pneg %p172
      $region54: #{cifar_classifier_forward.1} parent=51 // pred_check_branch
        %3055 = sbr.rel (%p3053) target = $region56
      $region55: #{cifar_classifier_forward.1} parent=51 // pred_region
        %p3056 = scmp.lt.s32.totalorder %s18, 1
        %s3057 = scalar_select %p3056, %s18, 1
        %s3058 = smul.addr %s3057, 16
        %s3059 = smul.addr %s3058, 8
        %s3060 = scalar_lea.vmem %s6, %s3059
      $region56: #{cifar_classifier_forward.1} parent=51 // pred_fallthru
        _
    $region52: #{cifar_classifier_forward.1} parent=5 // pred_fallthru
      _
  $region6: #{cifar_classifier_forward.1} parent=0 // loop_footer
    %s16 = sadd.s32 1, %s12
  $region7: #{cifar_classifier_forward.1} parent=0 // loop_footer_branch
    %11 = sbr.rel target = $region3
  $region8: #{cifar_classifier_forward.1} parent=0 // loop_exit
    _

</llo_original>
